<compile_context>
chip_gen: v7x
topology: tpu7x:2x2x1
jax: 0.10.0
libtpu: 0.0.40
codegen_flags: <defaults>
</compile_context>

<pallas_src>
import math

import jax
import jax.numpy as jnp
import numpy as np
from jax.experimental import pallas as pl
from jax.experimental.pallas import tpu as pltpu

# ---- problem sizes (small, consistent with the module: dim divisible by 4) ----
BATCH, FRAMES = 2, 2
DIM = 32              # "dim"
HID = 64              # "hidden_dim"
H = W = 8             # spatial
DC = DIM // 4         # dim_conv      (channels fed to the partial 3x3 conv)
DU = DIM - DC         # dim_untouched
HW = H * W            # tokens per image
TL = 128              # tokens (lanes) per grid step (= 2 whole images here)

_SQRT_HALF = 1.0 / math.sqrt(2.0)


def _gelu(v):
    # exact (erf) GELU, matching torch.nn.GELU(approximate='none')
    return 0.5 * v * (1.0 + jax.lax.erf(v * _SQRT_HALF))


def _shift_tokens(v, s):
    """shifted[:, t] = v[:, (t + s) % TL]; wrap-around lanes are masked by the caller."""
    if s == 0:
        return v
    # pltpu.roll follows np.roll semantics: result[..., i] = x[..., i - shift].
    return pltpu.roll(v, shift=(-s) % TL, axis=1)


def _frfn_kernel(x_ref, mask_ref, w1f_ref, b1_ref, wdw_ref, bdw_ref,
                 w2_ref, b2_ref, o_ref):
    f32 = jnp.float32
    bf16 = jnp.bfloat16

    x = x_ref[...]                       # (DIM, TL) f32: channels on sublanes, tokens on lanes
    x1 = x[:DC, :]                       # (DC, TL)  partial-conv channels
    x2 = x[DC:, :]                       # (DU, TL)  untouched channels

    # ---- in-kernel im2col of the conv channels: 9 masked lane-rolls --------
    pieces = []
    for k in range(9):
        dy, dx = divmod(k, 3)
        s = (dy - 1) * W + (dx - 1)      # token shift for spatial offset (dy-1, dx-1)
        p = _shift_tokens(x1, s)
        if s != 0:
            p = p * mask_ref[k:k + 1, :]
        pieces.append(p)
    pieces.append(x2)
    xk = jnp.concatenate(pieces, axis=0)                       # (9*DC + DU = 96, TL)

    # ---- (partial conv o linear1) + bias: one lane-dense MXU dot, bf16 in / f32 acc
    h = jnp.dot(w1f_ref[...], xk.astype(bf16),
                preferred_element_type=f32) + b1_ref[...]      # (2*HID, TL)
    h = _gelu(h)
    h1 = h[:HID, :]                      # chunk(2, dim=-1): free sublane split
    h2 = h[HID:, :]

    # ---- depthwise 3x3 conv on h1: 9 lane-rolls + border masks, no VMEM scratch
    y = jnp.zeros((HID, TL), f32)
    for k in range(9):
        dy, dx = divmod(k, 3)
        s = (dy - 1) * W + (dx - 1)
        p = _shift_tokens(h1, s)
        if s != 0:
            p = p * mask_ref[k:k + 1, :]
        y = y + p * wdw_ref[:, k:k + 1]
    y = _gelu(y + bdw_ref[...])

    # ---- gate + linear2 (+bias): lane-dense bf16 output store ---------------
    z = (y * h2).astype(bf16)                                   # (HID, TL)
    out = jnp.dot(w2_ref[...], z, preferred_element_type=f32) + b2_ref[...]
    o_ref[...] = out.astype(o_ref.dtype)                        # (DIM, TL) bf16


def frfn_forward(x, params):
    B, F, C, hh, ww = x.shape
    assert C == DIM and hh == H and ww == W
    bf = B * F
    n_tok = bf * HW
    assert TL % HW == 0 and n_tok % TL == 0      # every grid step covers whole images
    hp = jax.lax.Precision.HIGHEST

    # ---- activations: channel-major (DIM, n_tok); 1x the real input bytes ----
    x_ct = jnp.transpose(x.reshape(bf, C, HW), (1, 0, 2)).reshape(C, n_tok)
    x_ct = x_ct.astype(jnp.float32)

    # ---- weight packing (once, tiny, in XLA) ---------------------------------
    w1 = params["w1"].astype(jnp.float32)                        # (2*HID, DIM) torch layout
    w1c, w1u = w1[:, :DC], w1[:, DC:]
    wpc = params["w_pc"].astype(jnp.float32).reshape(DC, DC, 9)  # (cout, cin, ky*3+kx)
    # fold the partial 3x3 conv into linear1: Wf_k = W1c @ Wpc_k  (tap-major columns)
    wf = jnp.einsum("oc,cik->oki", w1c, wpc, precision=hp).reshape(2 * HID, 9 * DC)
    w1f = jnp.concatenate([wf, w1u], axis=1).astype(jnp.bfloat16)    # (2*HID, 96) bf16
    b1 = params["b1"].reshape(2 * HID, 1).astype(jnp.float32)
    wdw = params["w_dw"][:, 0].reshape(HID, 9).astype(jnp.float32)   # per-channel taps
    bdw = params["b_dw"].reshape(HID, 1).astype(jnp.float32)
    w2 = params["w2"].astype(jnp.bfloat16)                           # (DIM, HID) bf16
    b2 = params["b2"].reshape(DIM, 1).astype(jnp.float32)

    # ---- static per-tap border masks over the token (lane) axis --------------
    t = np.arange(TL)
    r, c = (t % HW) // W, t % W
    masks = np.zeros((9, TL), np.float32)
    for k in range(9):
        dy, dx = divmod(k, 3)
        dy, dx = dy - 1, dx - 1
        masks[k] = ((r + dy >= 0) & (r + dy < H) & (c + dx >= 0) & (c + dx < W))
    masks = jnp.asarray(masks)

    def wspec(arr):
        nd = arr.ndim
        return pl.BlockSpec(arr.shape, lambda b, nd=nd: (0,) * nd)  # VMEM-resident constants

    out_ct = pl.pallas_call(
        _frfn_kernel,
        out_shape=jax.ShapeDtypeStruct((DIM, n_tok), jnp.bfloat16),
        grid_spec=pltpu.PrefetchScalarGridSpec(
            num_scalar_prefetch=0,
            grid=(n_tok // TL,),
            in_specs=[pl.BlockSpec((DIM, TL), lambda b: (0, b)),
                      wspec(masks), wspec(w1f), wspec(b1),
                      wspec(wdw), wspec(bdw), wspec(w2), wspec(b2)],
            out_specs=pl.BlockSpec((DIM, TL), lambda b: (0, b))),
        compiler_params=pltpu.CompilerParams(
            dimension_semantics=("parallel",)),
    )(x_ct, masks, w1f, b1, wdw, bdw, w2, b2)

    out = jnp.transpose(out_ct.reshape(DIM, bf, hh, ww), (1, 0, 2, 3))
    return out.reshape(B, F, C, hh, ww).astype(jnp.float32)


def frfn_reference(x, params):
    """Pure-JAX f32 (HIGHEST precision) reference mirroring the PyTorch forward."""
    hp = jax.lax.Precision.HIGHEST
    B, F, C, hh, ww = x.shape
    xb = x.reshape(B * F, C, hh, ww)
    x1, x2 = xb[:, :DC], xb[:, DC:]
    x1 = jax.lax.conv_general_dilated(
        x1, params["w_pc"], (1, 1), "SAME",
        dimension_numbers=("NCHW", "OIHW", "NCHW"), precision=hp)
    xc = jnp.concatenate([x1, x2], axis=1)
    t = jnp.transpose(xc.reshape(B * F, C, hh * ww), (0, 2, 1))            # b (h w) c
    t = _gelu(jnp.matmul(t, params["w1"].T, precision=hp) + params["b1"])
    t1, t2 = t[..., :HID], t[..., HID:]
    t1 = jnp.transpose(t1, (0, 2, 1)).reshape(B * F, HID, hh, ww)
    t1 = jax.lax.conv_general_dilated(
        t1, params["w_dw"], (1, 1), "SAME",
        dimension_numbers=("NCHW", "OIHW", "NCHW"),
        feature_group_count=HID, precision=hp) + params["b_dw"][None, :, None, None]
    t1 = _gelu(t1)
    t1 = jnp.transpose(t1.reshape(B * F, HID, hh * ww), (0, 2, 1))
    t = jnp.matmul(t1 * t2, params["w2"].T, precision=hp) + params["b2"]
    return jnp.transpose(t, (0, 2, 1)).reshape(B, F, C, hh, ww)


if __name__ == "__main__":
    key = jax.random.PRNGKey(0)
    ks = jax.random.split(key, 8)
    x = jax.random.normal(ks[0], (BATCH, FRAMES, DIM, H, W), jnp.float32)
    params = {
        # torch layouts: Conv2d OIHW, Linear (out, in)
        "w_pc": jax.random.normal(ks[1], (DC, DC, 3, 3), jnp.float32) / math.sqrt(DC * 9),
        "w1":   jax.random.normal(ks[2], (2 * HID, DIM), jnp.float32) / math.sqrt(DIM),
        "b1":   jax.random.normal(ks[3], (2 * HID,), jnp.float32) * 0.1,
        "w_dw": jax.random.normal(ks[4], (HID, 1, 3, 3), jnp.float32) / 3.0,
        "b_dw": jax.random.normal(ks[5], (HID,), jnp.float32) * 0.1,
        "w2":   jax.random.normal(ks[6], (DIM, HID), jnp.float32) / math.sqrt(HID),
        "b2":   jax.random.normal(ks[7], (DIM,), jnp.float32) * 0.1,
    }

    out = jax.block_until_ready(frfn_forward(x, params))
    ref = jax.block_until_ready(frfn_reference(x, params))
    # Kernel uses bf16 MXU operands, bf16-folded conv/linear1 weight and a bf16
    # output store; tolerance is sized for bf16-class error vs the f32 reference.
    np.testing.assert_allclose(np.asarray(out), np.asarray(ref), rtol=3e-2, atol=3e-2)
    print("KERNEL_OK")
</pallas_src>

<mosaic_0001>
module attributes {stable_mosaic.version = 11 : i64} {
  func.func @_frfn_kernel(%arg0: i32, %arg1: memref<32x128xf32, #tpu.memory_space<vmem>>, %arg2: memref<9x128xf32, #tpu.memory_space<vmem>>, %arg3: memref<128x96xbf16, #tpu.memory_space<vmem>>, %arg4: memref<128x1xf32, #tpu.memory_space<vmem>>, %arg5: memref<64x9xf32, #tpu.memory_space<vmem>>, %arg6: memref<64x1xf32, #tpu.memory_space<vmem>>, %arg7: memref<32x64xbf16, #tpu.memory_space<vmem>>, %arg8: memref<32x1xf32, #tpu.memory_space<vmem>>, %arg9: memref<32x128xbf16, #tpu.memory_space<vmem>>) attributes {dimension_semantics = [#tpu.dimension_semantics<parallel>], iteration_bounds = array<i64: 2>, scalar_prefetch = 0 : i64, scratch_operands = 0 : i64, tpu.core_type = #tpu.core_type<tc>, window_params = [{transform_indices = @transform_0, window_bounds = array<i64: 32, 128>}, {pipeline_mode = #tpu.pipeline_mode<synchronous>, transform_indices = @transform_1, window_bounds = array<i64: 9, 128>}, {pipeline_mode = #tpu.pipeline_mode<synchronous>, transform_indices = @transform_2, window_bounds = array<i64: 128, 96>}, {pipeline_mode = #tpu.pipeline_mode<synchronous>, transform_indices = @transform_3, window_bounds = array<i64: 128, 1>}, {pipeline_mode = #tpu.pipeline_mode<synchronous>, transform_indices = @transform_4, window_bounds = array<i64: 64, 9>}, {pipeline_mode = #tpu.pipeline_mode<synchronous>, transform_indices = @transform_5, window_bounds = array<i64: 64, 1>}, {pipeline_mode = #tpu.pipeline_mode<synchronous>, transform_indices = @transform_6, window_bounds = array<i64: 32, 64>}, {pipeline_mode = #tpu.pipeline_mode<synchronous>, transform_indices = @transform_7, window_bounds = array<i64: 32, 1>}, {transform_indices = @transform_8, window_bounds = array<i64: 32, 128>}]} {
    %c0 = arith.constant 0 : index
    %c0_0 = arith.constant 0 : index
    %0 = vector.load %arg1[%c0, %c0_0] : memref<32x128xf32, #tpu.memory_space<vmem>>, vector<32x128xf32>
    %1 = vector.extract_strided_slice %0 {offsets = [0, 0], sizes = [8, 128], strides = [1, 1]} : vector<32x128xf32> to vector<8x128xf32>
    %2 = vector.extract_strided_slice %0 {offsets = [8, 0], sizes = [24, 128], strides = [1, 1]} : vector<32x128xf32> to vector<24x128xf32>
    %c9_i32 = arith.constant 9 : i32
    %3 = tpu.dynamic_rotate %1 by %c9_i32 dim 1 : vector<8x128xf32>, i32 -> vector<8x128xf32>
    %c0_1 = arith.constant 0 : index
    %c0_2 = arith.constant 0 : index
    %4 = vector.load %arg2[%c0_1, %c0_2] : memref<9x128xf32, #tpu.memory_space<vmem>>, vector<1x128xf32>
    %5 = vector.broadcast %4 : vector<1x128xf32> to vector<8x128xf32>
    %6 = arith.mulf %3, %5 : vector<8x128xf32>
    %c8_i32 = arith.constant 8 : i32
    %7 = tpu.dynamic_rotate %1 by %c8_i32 dim 1 : vector<8x128xf32>, i32 -> vector<8x128xf32>
    %c1 = arith.constant 1 : index
    %c0_3 = arith.constant 0 : index
    %8 = vector.load %arg2[%c1, %c0_3] : memref<9x128xf32, #tpu.memory_space<vmem>>, vector<1x128xf32>
    %9 = vector.broadcast %8 : vector<1x128xf32> to vector<8x128xf32>
    %10 = arith.mulf %7, %9 : vector<8x128xf32>
    %c7_i32 = arith.constant 7 : i32
    %11 = tpu.dynamic_rotate %1 by %c7_i32 dim 1 : vector<8x128xf32>, i32 -> vector<8x128xf32>
    %c2 = arith.constant 2 : index
    %c0_4 = arith.constant 0 : index
    %12 = vector.load %arg2[%c2, %c0_4] : memref<9x128xf32, #tpu.memory_space<vmem>>, vector<1x128xf32>
    %13 = vector.broadcast %12 : vector<1x128xf32> to vector<8x128xf32>
    %14 = arith.mulf %11, %13 : vector<8x128xf32>
    %c1_i32 = arith.constant 1 : i32
    %15 = tpu.dynamic_rotate %1 by %c1_i32 dim 1 : vector<8x128xf32>, i32 -> vector<8x128xf32>
    %c3 = arith.constant 3 : index
    %c0_5 = arith.constant 0 : index
    %16 = vector.load %arg2[%c3, %c0_5] : memref<9x128xf32, #tpu.memory_space<vmem>>, vector<1x128xf32>
    %17 = vector.broadcast %16 : vector<1x128xf32> to vector<8x128xf32>
    %18 = arith.mulf %15, %17 : vector<8x128xf32>
    %c127_i32 = arith.constant 127 : i32
    %19 = tpu.dynamic_rotate %1 by %c127_i32 dim 1 : vector<8x128xf32>, i32 -> vector<8x128xf32>
    %c5 = arith.constant 5 : index
    %c0_6 = arith.constant 0 : index
    %20 = vector.load %arg2[%c5, %c0_6] : memref<9x128xf32, #tpu.memory_space<vmem>>, vector<1x128xf32>
    %21 = vector.broadcast %20 : vector<1x128xf32> to vector<8x128xf32>
    %22 = arith.mulf %19, %21 : vector<8x128xf32>
    %c121_i32 = arith.constant 121 : i32
    %23 = tpu.dynamic_rotate %1 by %c121_i32 dim 1 : vector<8x128xf32>, i32 -> vector<8x128xf32>
    %c6 = arith.constant 6 : index
    %c0_7 = arith.constant 0 : index
    %24 = vector.load %arg2[%c6, %c0_7] : memref<9x128xf32, #tpu.memory_space<vmem>>, vector<1x128xf32>
    %25 = vector.broadcast %24 : vector<1x128xf32> to vector<8x128xf32>
    %26 = arith.mulf %23, %25 : vector<8x128xf32>
    %c120_i32 = arith.constant 120 : i32
    %27 = tpu.dynamic_rotate %1 by %c120_i32 dim 1 : vector<8x128xf32>, i32 -> vector<8x128xf32>
    %c7 = arith.constant 7 : index
    %c0_8 = arith.constant 0 : index
    %28 = vector.load %arg2[%c7, %c0_8] : memref<9x128xf32, #tpu.memory_space<vmem>>, vector<1x128xf32>
    %29 = vector.broadcast %28 : vector<1x128xf32> to vector<8x128xf32>
    %30 = arith.mulf %27, %29 : vector<8x128xf32>
    %c119_i32 = arith.constant 119 : i32
    %31 = tpu.dynamic_rotate %1 by %c119_i32 dim 1 : vector<8x128xf32>, i32 -> vector<8x128xf32>
    %c8 = arith.constant 8 : index
    %c0_9 = arith.constant 0 : index
    %32 = vector.load %arg2[%c8, %c0_9] : memref<9x128xf32, #tpu.memory_space<vmem>>, vector<1x128xf32>
    %33 = vector.broadcast %32 : vector<1x128xf32> to vector<8x128xf32>
    %34 = arith.mulf %31, %33 : vector<8x128xf32>
    %35 = tpu.concatenate %6, %10, %14, %18, %1, %22, %26, %30, %34, %2 in 0 : vector<8x128xf32>, vector<8x128xf32>, vector<8x128xf32>, vector<8x128xf32>, vector<8x128xf32>, vector<8x128xf32>, vector<8x128xf32>, vector<8x128xf32>, vector<8x128xf32>, vector<24x128xf32> -> vector<96x128xf32>
    %c0_10 = arith.constant 0 : index
    %c0_11 = arith.constant 0 : index
    %36 = vector.load %arg3[%c0_10, %c0_11] : memref<128x96xbf16, #tpu.memory_space<vmem>>, vector<128x96xbf16>
    %37 = arith.truncf %35 : vector<96x128xf32> to vector<96x128xbf16>
    %cst = arith.constant dense<0.000000e+00> : vector<128x128xf32>
    %38 = tpu.matmul %36, %37, %cst {dimension_numbers = #tpu.dot_dimension_numbers<[1], [0], [0], [1], [0, 0, 1, 1], [], []>} : vector<128x96xbf16>, vector<96x128xbf16>, vector<128x128xf32> -> vector<128x128xf32>
    %c0_12 = arith.constant 0 : index
    %c0_13 = arith.constant 0 : index
    %39 = vector.load %arg4[%c0_12, %c0_13] : memref<128x1xf32, #tpu.memory_space<vmem>>, vector<128x1xf32>
    %40 = vector.broadcast %39 : vector<128x1xf32> to vector<128x128xf32>
    %41 = arith.addf %38, %40 : vector<128x128xf32>
    %cst_14 = arith.constant 5.000000e-01 : f32
    %42 = vector.broadcast %cst_14 : f32 to vector<128x128xf32>
    %43 = arith.mulf %42, %41 : vector<128x128xf32>
    %cst_15 = arith.constant 0.707106769 : f32
    %44 = vector.broadcast %cst_15 : f32 to vector<128x128xf32>
    %45 = arith.mulf %41, %44 : vector<128x128xf32>
    %46 = math.erf %45 : vector<128x128xf32>
    %cst_16 = arith.constant 1.000000e+00 : f32
    %47 = vector.broadcast %cst_16 : f32 to vector<128x128xf32>
    %48 = arith.addf %47, %46 : vector<128x128xf32>
    %49 = arith.mulf %43, %48 : vector<128x128xf32>
    %50 = vector.extract_strided_slice %49 {offsets = [0, 0], sizes = [64, 128], strides = [1, 1]} : vector<128x128xf32> to vector<64x128xf32>
    %51 = vector.extract_strided_slice %49 {offsets = [64, 0], sizes = [64, 128], strides = [1, 1]} : vector<128x128xf32> to vector<64x128xf32>
    %cst_17 = arith.constant 0.000000e+00 : f32
    %52 = vector.broadcast %cst_17 : f32 to vector<64x128xf32>
    %c9_i32_18 = arith.constant 9 : i32
    %53 = tpu.dynamic_rotate %50 by %c9_i32_18 dim 1 : vector<64x128xf32>, i32 -> vector<64x128xf32>
    %c0_19 = arith.constant 0 : index
    %c0_20 = arith.constant 0 : index
    %54 = vector.load %arg2[%c0_19, %c0_20] : memref<9x128xf32, #tpu.memory_space<vmem>>, vector<1x128xf32>
    %55 = vector.broadcast %54 : vector<1x128xf32> to vector<64x128xf32>
    %56 = arith.mulf %53, %55 : vector<64x128xf32>
    %c0_21 = arith.constant 0 : index
    %c0_22 = arith.constant 0 : index
    %57 = vector.load %arg5[%c0_21, %c0_22] : memref<64x9xf32, #tpu.memory_space<vmem>>, vector<64x1xf32>
    %58 = vector.broadcast %57 : vector<64x1xf32> to vector<64x128xf32>
    %59 = arith.mulf %56, %58 : vector<64x128xf32>
    %60 = arith.addf %52, %59 : vector<64x128xf32>
    %c8_i32_23 = arith.constant 8 : i32
    %61 = tpu.dynamic_rotate %50 by %c8_i32_23 dim 1 : vector<64x128xf32>, i32 -> vector<64x128xf32>
    %c1_24 = arith.constant 1 : index
    %c0_25 = arith.constant 0 : index
    %62 = vector.load %arg2[%c1_24, %c0_25] : memref<9x128xf32, #tpu.memory_space<vmem>>, vector<1x128xf32>
    %63 = vector.broadcast %62 : vector<1x128xf32> to vector<64x128xf32>
    %64 = arith.mulf %61, %63 : vector<64x128xf32>
    %c0_26 = arith.constant 0 : index
    %c1_27 = arith.constant 1 : index
    %65 = vector.load %arg5[%c0_26, %c1_27] : memref<64x9xf32, #tpu.memory_space<vmem>>, vector<64x1xf32>
    %66 = vector.broadcast %65 : vector<64x1xf32> to vector<64x128xf32>
    %67 = arith.mulf %64, %66 : vector<64x128xf32>
    %68 = arith.addf %60, %67 : vector<64x128xf32>
    %c7_i32_28 = arith.constant 7 : i32
    %69 = tpu.dynamic_rotate %50 by %c7_i32_28 dim 1 : vector<64x128xf32>, i32 -> vector<64x128xf32>
    %c2_29 = arith.constant 2 : index
    %c0_30 = arith.constant 0 : index
    %70 = vector.load %arg2[%c2_29, %c0_30] : memref<9x128xf32, #tpu.memory_space<vmem>>, vector<1x128xf32>
    %71 = vector.broadcast %70 : vector<1x128xf32> to vector<64x128xf32>
    %72 = arith.mulf %69, %71 : vector<64x128xf32>
    %c0_31 = arith.constant 0 : index
    %c2_32 = arith.constant 2 : index
    %73 = vector.load %arg5[%c0_31, %c2_32] : memref<64x9xf32, #tpu.memory_space<vmem>>, vector<64x1xf32>
    %74 = vector.broadcast %73 : vector<64x1xf32> to vector<64x128xf32>
    %75 = arith.mulf %72, %74 : vector<64x128xf32>
    %76 = arith.addf %68, %75 : vector<64x128xf32>
    %c1_i32_33 = arith.constant 1 : i32
    %77 = tpu.dynamic_rotate %50 by %c1_i32_33 dim 1 : vector<64x128xf32>, i32 -> vector<64x128xf32>
    %c3_34 = arith.constant 3 : index
    %c0_35 = arith.constant 0 : index
    %78 = vector.load %arg2[%c3_34, %c0_35] : memref<9x128xf32, #tpu.memory_space<vmem>>, vector<1x128xf32>
    %79 = vector.broadcast %78 : vector<1x128xf32> to vector<64x128xf32>
    %80 = arith.mulf %77, %79 : vector<64x128xf32>
    %c0_36 = arith.constant 0 : index
    %c3_37 = arith.constant 3 : index
    %81 = vector.load %arg5[%c0_36, %c3_37] : memref<64x9xf32, #tpu.memory_space<vmem>>, vector<64x1xf32>
    %82 = vector.broadcast %81 : vector<64x1xf32> to vector<64x128xf32>
    %83 = arith.mulf %80, %82 : vector<64x128xf32>
    %84 = arith.addf %76, %83 : vector<64x128xf32>
    %c0_38 = arith.constant 0 : index
    %c4 = arith.constant 4 : index
    %85 = vector.load %arg5[%c0_38, %c4] : memref<64x9xf32, #tpu.memory_space<vmem>>, vector<64x1xf32>
    %86 = vector.broadcast %85 : vector<64x1xf32> to vector<64x128xf32>
    %87 = arith.mulf %50, %86 : vector<64x128xf32>
    %88 = arith.addf %84, %87 : vector<64x128xf32>
    %c127_i32_39 = arith.constant 127 : i32
    %89 = tpu.dynamic_rotate %50 by %c127_i32_39 dim 1 : vector<64x128xf32>, i32 -> vector<64x128xf32>
    %c5_40 = arith.constant 5 : index
    %c0_41 = arith.constant 0 : index
    %90 = vector.load %arg2[%c5_40, %c0_41] : memref<9x128xf32, #tpu.memory_space<vmem>>, vector<1x128xf32>
    %91 = vector.broadcast %90 : vector<1x128xf32> to vector<64x128xf32>
    %92 = arith.mulf %89, %91 : vector<64x128xf32>
    %c0_42 = arith.constant 0 : index
    %c5_43 = arith.constant 5 : index
    %93 = vector.load %arg5[%c0_42, %c5_43] : memref<64x9xf32, #tpu.memory_space<vmem>>, vector<64x1xf32>
    %94 = vector.broadcast %93 : vector<64x1xf32> to vector<64x128xf32>
    %95 = arith.mulf %92, %94 : vector<64x128xf32>
    %96 = arith.addf %88, %95 : vector<64x128xf32>
    %c121_i32_44 = arith.constant 121 : i32
    %97 = tpu.dynamic_rotate %50 by %c121_i32_44 dim 1 : vector<64x128xf32>, i32 -> vector<64x128xf32>
    %c6_45 = arith.constant 6 : index
    %c0_46 = arith.constant 0 : index
    %98 = vector.load %arg2[%c6_45, %c0_46] : memref<9x128xf32, #tpu.memory_space<vmem>>, vector<1x128xf32>
    %99 = vector.broadcast %98 : vector<1x128xf32> to vector<64x128xf32>
    %100 = arith.mulf %97, %99 : vector<64x128xf32>
    %c0_47 = arith.constant 0 : index
    %c6_48 = arith.constant 6 : index
    %101 = vector.load %arg5[%c0_47, %c6_48] : memref<64x9xf32, #tpu.memory_space<vmem>>, vector<64x1xf32>
    %102 = vector.broadcast %101 : vector<64x1xf32> to vector<64x128xf32>
    %103 = arith.mulf %100, %102 : vector<64x128xf32>
    %104 = arith.addf %96, %103 : vector<64x128xf32>
    %c120_i32_49 = arith.constant 120 : i32
    %105 = tpu.dynamic_rotate %50 by %c120_i32_49 dim 1 : vector<64x128xf32>, i32 -> vector<64x128xf32>
    %c7_50 = arith.constant 7 : index
    %c0_51 = arith.constant 0 : index
    %106 = vector.load %arg2[%c7_50, %c0_51] : memref<9x128xf32, #tpu.memory_space<vmem>>, vector<1x128xf32>
    %107 = vector.broadcast %106 : vector<1x128xf32> to vector<64x128xf32>
    %108 = arith.mulf %105, %107 : vector<64x128xf32>
    %c0_52 = arith.constant 0 : index
    %c7_53 = arith.constant 7 : index
    %109 = vector.load %arg5[%c0_52, %c7_53] : memref<64x9xf32, #tpu.memory_space<vmem>>, vector<64x1xf32>
    %110 = vector.broadcast %109 : vector<64x1xf32> to vector<64x128xf32>
    %111 = arith.mulf %108, %110 : vector<64x128xf32>
    %112 = arith.addf %104, %111 : vector<64x128xf32>
    %c119_i32_54 = arith.constant 119 : i32
    %113 = tpu.dynamic_rotate %50 by %c119_i32_54 dim 1 : vector<64x128xf32>, i32 -> vector<64x128xf32>
    %c8_55 = arith.constant 8 : index
    %c0_56 = arith.constant 0 : index
    %114 = vector.load %arg2[%c8_55, %c0_56] : memref<9x128xf32, #tpu.memory_space<vmem>>, vector<1x128xf32>
    %115 = vector.broadcast %114 : vector<1x128xf32> to vector<64x128xf32>
    %116 = arith.mulf %113, %115 : vector<64x128xf32>
    %c0_57 = arith.constant 0 : index
    %c8_58 = arith.constant 8 : index
    %117 = vector.load %arg5[%c0_57, %c8_58] : memref<64x9xf32, #tpu.memory_space<vmem>>, vector<64x1xf32>
    %118 = vector.broadcast %117 : vector<64x1xf32> to vector<64x128xf32>
    %119 = arith.mulf %116, %118 : vector<64x128xf32>
    %120 = arith.addf %112, %119 : vector<64x128xf32>
    %c0_59 = arith.constant 0 : index
    %c0_60 = arith.constant 0 : index
    %121 = vector.load %arg6[%c0_59, %c0_60] : memref<64x1xf32, #tpu.memory_space<vmem>>, vector<64x1xf32>
    %122 = vector.broadcast %121 : vector<64x1xf32> to vector<64x128xf32>
    %123 = arith.addf %120, %122 : vector<64x128xf32>
    %cst_61 = arith.constant 5.000000e-01 : f32
    %124 = vector.broadcast %cst_61 : f32 to vector<64x128xf32>
    %125 = arith.mulf %124, %123 : vector<64x128xf32>
    %cst_62 = arith.constant 0.707106769 : f32
    %126 = vector.broadcast %cst_62 : f32 to vector<64x128xf32>
    %127 = arith.mulf %123, %126 : vector<64x128xf32>
    %128 = math.erf %127 : vector<64x128xf32>
    %cst_63 = arith.constant 1.000000e+00 : f32
    %129 = vector.broadcast %cst_63 : f32 to vector<64x128xf32>
    %130 = arith.addf %129, %128 : vector<64x128xf32>
    %131 = arith.mulf %125, %130 : vector<64x128xf32>
    %132 = arith.mulf %131, %51 : vector<64x128xf32>
    %133 = arith.truncf %132 : vector<64x128xf32> to vector<64x128xbf16>
    %c0_64 = arith.constant 0 : index
    %c0_65 = arith.constant 0 : index
    %134 = vector.load %arg7[%c0_64, %c0_65] : memref<32x64xbf16, #tpu.memory_space<vmem>>, vector<32x64xbf16>
    %cst_66 = arith.constant dense<0.000000e+00> : vector<32x128xf32>
    %135 = tpu.matmul %134, %133, %cst_66 {dimension_numbers = #tpu.dot_dimension_numbers<[1], [0], [0], [1], [0, 0, 1, 1], [], []>} : vector<32x64xbf16>, vector<64x128xbf16>, vector<32x128xf32> -> vector<32x128xf32>
    %c0_67 = arith.constant 0 : index
    %c0_68 = arith.constant 0 : index
    %136 = vector.load %arg8[%c0_67, %c0_68] : memref<32x1xf32, #tpu.memory_space<vmem>>, vector<32x1xf32>
    %137 = vector.broadcast %136 : vector<32x1xf32> to vector<32x128xf32>
    %138 = arith.addf %135, %137 : vector<32x128xf32>
    %139 = arith.truncf %138 : vector<32x128xf32> to vector<32x128xbf16>
    %c0_69 = arith.constant 0 : index
    %c0_70 = arith.constant 0 : index
    %140 = vector.load %arg9[%c0_69, %c0_70] : memref<32x128xbf16, #tpu.memory_space<vmem>>, vector<32x128xbf16>
    tpu.vector_store %arg9[%c0_69, %c0_70], %139 {strides = array<i32>} : memref<32x128xbf16, #tpu.memory_space<vmem>>, vector<32x128xbf16>,
    return
  }
  func.func @transform_0(%arg0: i32) -> (i32, i32) {
    %c0_i32 = arith.constant 0 : i32
    %c0_i32_0 = arith.constant 0 : i32
    return %c0_i32, %arg0 : i32, i32
  }
  func.func @transform_1(%arg0: i32) -> (i32, i32) {
    %c0_i32 = arith.constant 0 : i32
    %c0_i32_0 = arith.constant 0 : i32
    %c0_i32_1 = arith.constant 0 : i32
    return %c0_i32, %c0_i32_0 : i32, i32
  }
  func.func @transform_2(%arg0: i32) -> (i32, i32) {
    %c0_i32 = arith.constant 0 : i32
    %c0_i32_0 = arith.constant 0 : i32
    %c0_i32_1 = arith.constant 0 : i32
    return %c0_i32, %c0_i32_0 : i32, i32
  }
  func.func @transform_3(%arg0: i32) -> (i32, i32) {
    %c0_i32 = arith.constant 0 : i32
    %c0_i32_0 = arith.constant 0 : i32
    %c0_i32_1 = arith.constant 0 : i32
    return %c0_i32, %c0_i32_0 : i32, i32
  }
  func.func @transform_4(%arg0: i32) -> (i32, i32) {
    %c0_i32 = arith.constant 0 : i32
    %c0_i32_0 = arith.constant 0 : i32
    %c0_i32_1 = arith.constant 0 : i32
    return %c0_i32, %c0_i32_0 : i32, i32
  }
  func.func @transform_5(%arg0: i32) -> (i32, i32) {
    %c0_i32 = arith.constant 0 : i32
    %c0_i32_0 = arith.constant 0 : i32
    %c0_i32_1 = arith.constant 0 : i32
    return %c0_i32, %c0_i32_0 : i32, i32
  }
  func.func @transform_6(%arg0: i32) -> (i32, i32) {
    %c0_i32 = arith.constant 0 : i32
    %c0_i32_0 = arith.constant 0 : i32
    %c0_i32_1 = arith.constant 0 : i32
    return %c0_i32, %c0_i32_0 : i32, i32
  }
  func.func @transform_7(%arg0: i32) -> (i32, i32) {
    %c0_i32 = arith.constant 0 : i32
    %c0_i32_0 = arith.constant 0 : i32
    %c0_i32_1 = arith.constant 0 : i32
    return %c0_i32, %c0_i32_0 : i32, i32
  }
  func.func @transform_8(%arg0: i32) -> (i32, i32) {
    %c0_i32 = arith.constant 0 : i32
    %c0_i32_0 = arith.constant 0 : i32
    return %c0_i32, %arg0 : i32, i32
  }
}

</mosaic_0001>

<llo_original>
// kernel: tpu_custom_call.1
$region0: #{tpu_custom_call.1}
  #allocation0 [shape = 'u32[]', space=smem, size = 0x4, offset = 0x4, fixed_abs, tag = 'smem constant byte address 0x4 - core index']
  #allocation1 [shape = 'u32[144,128]{1,0:T(1,128)}', space=vmem, size = 0x12000, scoped, tag = 'internal scratch']
  %s0 = inlined_call_operand.vmem [shape: f32[32,256], index: 0, kind: input, shape index: {}]
  %s1 = inlined_call_operand.vmem [shape: f32[9,128], index: 1, kind: input, shape index: {}]
  %s2 = inlined_call_operand.vmem [shape: bf16[128,96], index: 2, kind: input, shape index: {}]
  %s3 = inlined_call_operand.vmem [shape: f32[128,1], index: 3, kind: input, shape index: {}]
  %s4 = inlined_call_operand.vmem [shape: f32[64,9], index: 4, kind: input, shape index: {}]
  %s5 = inlined_call_operand.vmem [shape: f32[64,1], index: 5, kind: input, shape index: {}]
  %s6 = inlined_call_operand.vmem [shape: bf16[32,64], index: 6, kind: input, shape index: {}]
  %s7 = inlined_call_operand.vmem [shape: f32[32,1], index: 7, kind: input, shape index: {}]
  %s8 = inlined_call_operand.hbm [shape: bf16[32,256], index: 8, kind: output, shape index: {}]
  %s9 = sld [smem:[#allocation0]]
  $region103: #{tpu_custom_call.1} parent=0
    _
  %s11 = ssub.s32 1, %s9
  %s12 = scalar_select 0, %s11, %s9
  $region1: #{tpu_custom_call.1} parent=0
    #allocation2 [shape = 'u8[32768]{0}', space=vmem, size = 0x8000, scoped, tag = 'input window, operand 0']
    #allocation3 [shape = 'u8[16384]{0}', space=vmem, size = 0x4000, scoped, tag = 'output window, operand 0']
    #allocation4 [shape = 's32[2]{0}', space=sflag, size = 0x8, scoped, tag = 'scoped memory for tpu_custom_call.1']
    %13 = vsyncpa [#allocation4], 0
    %s14 = scalar_lea.sflag [#allocation4], 1
    %15 = vsyncpa %s14, 0
    loop: start=0, step=1, limit=4
    $region2: #{tpu_custom_call.1} parent=1 // loop_pre_header
      _
    $region3: #{tpu_custom_call.1} parent=1 // loop_header
      %s17 = sphi 0, %s21
      %p18 = scmp.ge.s32.totalorder %s17, 4
      %s27 = sphi 0, %s29
      %s30 = sphi 0, %s27
      %s31 = sphi 0, %s30
      %s47 = sphi 0, %s31
      %s51 = sphi 0, %s51
      %s53 = sphi 0, %s51
      %s54 = sphi 0, %s53
      %s68 = sphi 0, %s54
      %s72 = sphi 0, %s72
      %s74 = sphi 0, %s72
      %s75 = sphi 0, %s74
      %s89 = sphi 0, %s75
      %s93 = sphi 0, %s93
      %s95 = sphi 0, %s93
      %s96 = sphi 0, %s95
      %s110 = sphi 0, %s96
      %s114 = sphi 0, %s114
      %s116 = sphi 0, %s114
      %s117 = sphi 0, %s116
      %s131 = sphi 0, %s117
      %s135 = sphi 0, %s135
      %s137 = sphi 0, %s135
      %s138 = sphi 0, %s137
      %s152 = sphi 0, %s138
      %s156 = sphi 0, %s156
      %s158 = sphi 0, %s156
      %s159 = sphi 0, %s158
      %s173 = sphi 0, %s159
      %s177 = sphi 0, %s177
      %s179 = sphi 0, %s177
      %s180 = sphi 0, %s179
      %s194 = sphi 0, %s180
      %s200 = sphi 0, %s202
      %s203 = sphi 0, %s200
      %s204 = sphi 0, %s203
      %s220 = sphi 0, %s204
    $region4: #{tpu_custom_call.1} parent=1 // loop_header_branch
      %20 = sbr.rel (%p18) target = $region8
    $region5: #{tpu_custom_call.1} parent=1 // loop_body
      %s22 = ssub.s32 %s17, 1
      %s23 = ssub.s32 %s17, 2
      %s24 = sadd.s32 %s17, 1
      %s25 = ssub.s32 %s17, %s24
      %p26 = scmp.eq.s32.totalorder %s25, 0
      %s28 = sadd.s32 %s27, 1
      %s29 = scalar_select %p26, %s27, %s28
      %p32 = pneg %p26
      %p33 = scmp.eq.s32.totalorder %s17, 1
      %p34 = por %p32, %p33
      %p35 = scmp.ne.s32.totalorder %s27, %s30
      %p36 = scmp.eq.s32.totalorder %s17, 0
      %p37 = por %p35, %p36
      %p38 = scmp.ne.s32.totalorder %s27, %s30
      %p39 = scmp.eq.s32.totalorder %s22, 1
      %p40 = por %p38, %p39
      %p41 = scmp.ne.s32.totalorder %s30, %s31
      %p42 = scmp.eq.s32.totalorder %s22, 0
      %p43 = por %p41, %p42
      %p44 = scmp.ne.s32.totalorder %s30, %s31
      %p45 = scmp.eq.s32.totalorder %s23, 1
      %p46 = por %p44, %p45
      %p48 = scmp.ne.s32.totalorder %s31, %s47
      %p49 = scmp.eq.s32.totalorder %s23, 0
      %p50 = por %p48, %p49
      %s52 = sadd.s32 %s51, 1
      %p55 = scmp.eq.s32.totalorder %s17, 1
      %p56 = scmp.ne.s32.totalorder %s51, %s53
      %p57 = scmp.eq.s32.totalorder %s17, 0
      %p58 = por %p56, %p57
      %p59 = scmp.ne.s32.totalorder %s51, %s53
      %p60 = scmp.eq.s32.totalorder %s22, 1
      %p61 = por %p59, %p60
      %p62 = scmp.ne.s32.totalorder %s53, %s54
      %p63 = scmp.eq.s32.totalorder %s22, 0
      %p64 = por %p62, %p63
      %p65 = scmp.ne.s32.totalorder %s53, %s54
      %p66 = scmp.eq.s32.totalorder %s23, 1
      %p67 = por %p65, %p66
      %p69 = scmp.ne.s32.totalorder %s54, %s68
      %p70 = scmp.eq.s32.totalorder %s23, 0
      %p71 = por %p69, %p70
      %s73 = sadd.s32 %s72, 1
      %p76 = scmp.eq.s32.totalorder %s17, 1
      %p77 = scmp.ne.s32.totalorder %s72, %s74
      %p78 = scmp.eq.s32.totalorder %s17, 0
      %p79 = por %p77, %p78
      %p80 = scmp.ne.s32.totalorder %s72, %s74
      %p81 = scmp.eq.s32.totalorder %s22, 1
      %p82 = por %p80, %p81
      %p83 = scmp.ne.s32.totalorder %s74, %s75
      %p84 = scmp.eq.s32.totalorder %s22, 0
      %p85 = por %p83, %p84
      %p86 = scmp.ne.s32.totalorder %s74, %s75
      %p87 = scmp.eq.s32.totalorder %s23, 1
      %p88 = por %p86, %p87
      %p90 = scmp.ne.s32.totalorder %s75, %s89
      %p91 = scmp.eq.s32.totalorder %s23, 0
      %p92 = por %p90, %p91
      %s94 = sadd.s32 %s93, 1
      %p97 = scmp.eq.s32.totalorder %s17, 1
      %p98 = scmp.ne.s32.totalorder %s93, %s95
      %p99 = scmp.eq.s32.totalorder %s17, 0
      %p100 = por %p98, %p99
      %p101 = scmp.ne.s32.totalorder %s93, %s95
      %p102 = scmp.eq.s32.totalorder %s22, 1
      %p103 = por %p101, %p102
      %p104 = scmp.ne.s32.totalorder %s95, %s96
      %p105 = scmp.eq.s32.totalorder %s22, 0
      %p106 = por %p104, %p105
      %p107 = scmp.ne.s32.totalorder %s95, %s96
      %p108 = scmp.eq.s32.totalorder %s23, 1
      %p109 = por %p107, %p108
      %p111 = scmp.ne.s32.totalorder %s96, %s110
      %p112 = scmp.eq.s32.totalorder %s23, 0
      %p113 = por %p111, %p112
      %s115 = sadd.s32 %s114, 1
      %p118 = scmp.eq.s32.totalorder %s17, 1
      %p119 = scmp.ne.s32.totalorder %s114, %s116
      %p120 = scmp.eq.s32.totalorder %s17, 0
      %p121 = por %p119, %p120
      %p122 = scmp.ne.s32.totalorder %s114, %s116
      %p123 = scmp.eq.s32.totalorder %s22, 1
      %p124 = por %p122, %p123
      %p125 = scmp.ne.s32.totalorder %s116, %s117
      %p126 = scmp.eq.s32.totalorder %s22, 0
      %p127 = por %p125, %p126
      %p128 = scmp.ne.s32.totalorder %s116, %s117
      %p129 = scmp.eq.s32.totalorder %s23, 1
      %p130 = por %p128, %p129
      %p132 = scmp.ne.s32.totalorder %s117, %s131
      %p133 = scmp.eq.s32.totalorder %s23, 0
      %p134 = por %p132, %p133
      %s136 = sadd.s32 %s135, 1
      %p139 = scmp.eq.s32.totalorder %s17, 1
      %p140 = scmp.ne.s32.totalorder %s135, %s137
      %p141 = scmp.eq.s32.totalorder %s17, 0
      %p142 = por %p140, %p141
      %p143 = scmp.ne.s32.totalorder %s135, %s137
      %p144 = scmp.eq.s32.totalorder %s22, 1
      %p145 = por %p143, %p144
      %p146 = scmp.ne.s32.totalorder %s137, %s138
      %p147 = scmp.eq.s32.totalorder %s22, 0
      %p148 = por %p146, %p147
      %p149 = scmp.ne.s32.totalorder %s137, %s138
      %p150 = scmp.eq.s32.totalorder %s23, 1
      %p151 = por %p149, %p150
      %p153 = scmp.ne.s32.totalorder %s138, %s152
      %p154 = scmp.eq.s32.totalorder %s23, 0
      %p155 = por %p153, %p154
      %s157 = sadd.s32 %s156, 1
      %p160 = scmp.eq.s32.totalorder %s17, 1
      %p161 = scmp.ne.s32.totalorder %s156, %s158
      %p162 = scmp.eq.s32.totalorder %s17, 0
      %p163 = por %p161, %p162
      %p164 = scmp.ne.s32.totalorder %s156, %s158
      %p165 = scmp.eq.s32.totalorder %s22, 1
      %p166 = por %p164, %p165
      %p167 = scmp.ne.s32.totalorder %s158, %s159
      %p168 = scmp.eq.s32.totalorder %s22, 0
      %p169 = por %p167, %p168
      %p170 = scmp.ne.s32.totalorder %s158, %s159
      %p171 = scmp.eq.s32.totalorder %s23, 1
      %p172 = por %p170, %p171
      %p174 = scmp.ne.s32.totalorder %s159, %s173
      %p175 = scmp.eq.s32.totalorder %s23, 0
      %p176 = por %p174, %p175
      %s178 = sadd.s32 %s177, 1
      %p181 = scmp.eq.s32.totalorder %s17, 1
      %p182 = scmp.ne.s32.totalorder %s177, %s179
      %p183 = scmp.eq.s32.totalorder %s17, 0
      %p184 = por %p182, %p183
      %p185 = scmp.ne.s32.totalorder %s177, %s179
      %p186 = scmp.eq.s32.totalorder %s22, 1
      %p187 = por %p185, %p186
      %p188 = scmp.ne.s32.totalorder %s179, %s180
      %p189 = scmp.eq.s32.totalorder %s22, 0
      %p190 = por %p188, %p189
      %p191 = scmp.ne.s32.totalorder %s179, %s180
      %p192 = scmp.eq.s32.totalorder %s23, 1
      %p193 = por %p191, %p192
      %p195 = scmp.ne.s32.totalorder %s180, %s194
      %p196 = scmp.eq.s32.totalorder %s23, 0
      %p197 = por %p195, %p196
      %s198 = ssub.s32 %s17, %s24
      %p199 = scmp.eq.s32.totalorder %s198, 0
      %s201 = sadd.s32 %s200, 1
      %s202 = scalar_select %p199, %s200, %s201
      %p205 = pneg %p199
      %p206 = scmp.eq.s32.totalorder %s17, 1
      %p207 = por %p205, %p206
      %p208 = scmp.ne.s32.totalorder %s200, %s203
      %p209 = scmp.eq.s32.totalorder %s17, 0
      %p210 = por %p208, %p209
      %p211 = scmp.ne.s32.totalorder %s200, %s203
      %p212 = scmp.eq.s32.totalorder %s22, 1
      %p213 = por %p211, %p212
      %p214 = scmp.ne.s32.totalorder %s203, %s204
      %p215 = scmp.eq.s32.totalorder %s22, 0
      %p216 = por %p214, %p215
      %p217 = scmp.ne.s32.totalorder %s203, %s204
      %p218 = scmp.eq.s32.totalorder %s23, 1
      %p219 = por %p217, %p218
      %p221 = scmp.ne.s32.totalorder %s204, %s220
      %p222 = scmp.eq.s32.totalorder %s23, 0
      %p223 = por %p221, %p222
      %p224 = scmp.le.s32.totalorder 1, %s17
      %p225 = scmp.lt.s32.totalorder %s17, 3
      %p226 = pnand %p224, %p225
      %p227 = pneg %p226
      // Predicated region
      $region9: #{tpu_custom_call.1} parent=5 // pred_check
        _
      $region10: #{tpu_custom_call.1} parent=5 // pred_check_branch
        %229 = sbr.rel (%p226) target = $region12
      $region11: #{tpu_custom_call.1} parent=5 // pred_region
        %s230 = ssub.s32 %s17, 1
        // Predicated region
        $region13: #{tpu_custom_call.1} parent=11 // pred_check
          %p231 = pneg %p64
        $region14: #{tpu_custom_call.1} parent=11 // pred_check_branch
          %233 = sbr.rel (%p231) target = $region16
        $region15: #{tpu_custom_call.1} parent=11 // pred_region
          _
        $region16: #{tpu_custom_call.1} parent=11 // pred_fallthru
          _
        // Predicated region
        $region17: #{tpu_custom_call.1} parent=11 // pred_check
          %p234 = pneg %p85
        $region18: #{tpu_custom_call.1} parent=11 // pred_check_branch
          %236 = sbr.rel (%p234) target = $region20
        $region19: #{tpu_custom_call.1} parent=11 // pred_region
          _
        $region20: #{tpu_custom_call.1} parent=11 // pred_fallthru
          _
        // Predicated region
        $region21: #{tpu_custom_call.1} parent=11 // pred_check
          %p237 = pneg %p106
        $region22: #{tpu_custom_call.1} parent=11 // pred_check_branch
          %239 = sbr.rel (%p237) target = $region24
        $region23: #{tpu_custom_call.1} parent=11 // pred_region
          _
        $region24: #{tpu_custom_call.1} parent=11 // pred_fallthru
          _
        // Predicated region
        $region25: #{tpu_custom_call.1} parent=11 // pred_check
          %p240 = pneg %p127
        $region26: #{tpu_custom_call.1} parent=11 // pred_check_branch
          %242 = sbr.rel (%p240) target = $region28
        $region27: #{tpu_custom_call.1} parent=11 // pred_region
          _
        $region28: #{tpu_custom_call.1} parent=11 // pred_fallthru
          _
        // Predicated region
        $region29: #{tpu_custom_call.1} parent=11 // pred_check
          %p243 = pneg %p148
        $region30: #{tpu_custom_call.1} parent=11 // pred_check_branch
          %245 = sbr.rel (%p243) target = $region32
        $region31: #{tpu_custom_call.1} parent=11 // pred_region
          _
        $region32: #{tpu_custom_call.1} parent=11 // pred_fallthru
          _
        // Predicated region
        $region33: #{tpu_custom_call.1} parent=11 // pred_check
          %p246 = pneg %p169
        $region34: #{tpu_custom_call.1} parent=11 // pred_check_branch
          %248 = sbr.rel (%p246) target = $region36
        $region35: #{tpu_custom_call.1} parent=11 // pred_region
          _
        $region36: #{tpu_custom_call.1} parent=11 // pred_fallthru
          _
        // Predicated region
        $region37: #{tpu_custom_call.1} parent=11 // pred_check
          %p249 = pneg %p190
        $region38: #{tpu_custom_call.1} parent=11 // pred_check_branch
          %251 = sbr.rel (%p249) target = $region40
        $region39: #{tpu_custom_call.1} parent=11 // pred_region
          _
        $region40: #{tpu_custom_call.1} parent=11 // pred_fallthru
          _
      $region12: #{tpu_custom_call.1} parent=5 // pred_fallthru
        _
      %p252 = scmp.lt.s32.totalorder %s17, 2
      // Predicated region
      $region41: #{tpu_custom_call.1} parent=5 // pred_check
        %p253 = pneg %p252
      $region42: #{tpu_custom_call.1} parent=5 // pred_check_branch
        %255 = sbr.rel (%p253) target = $region44
      $region43: #{tpu_custom_call.1} parent=5 // pred_region
        // Predicated region
        $region45: #{tpu_custom_call.1} parent=43 // pred_check
          %p256 = pneg %p37
        $region46: #{tpu_custom_call.1} parent=43 // pred_check_branch
          %258 = sbr.rel (%p256) target = $region48
        $region47: #{tpu_custom_call.1} parent=43 // pred_region
          %s259 = sand.u32 %s27, 1
          %s260 = sand.u32 %s27, 1
          %s261 = smul.addr %s260, 32
          %s262 = scalar_lea.vmem [#allocation2], %s261
          %s263 = smul.addr %s17, 8
          %s264 = scalar_lea.vmem %s0, %s263
          // Predicated region
          $region49: #{tpu_custom_call.1} parent=47 // pred_check
            _
          $region50: #{tpu_custom_call.1} parent=47 // pred_check_branch
            %266 = sbr.rel (0) target = $region52
          $region51: #{tpu_custom_call.1} parent=47 // pred_region
            // Predicated region
            $region53: #{tpu_custom_call.1} parent=51 // pred_check
              _
            $region54: #{tpu_custom_call.1} parent=51 // pred_check_branch
              %268 = sbr.rel (0) target = $region56
            $region55: #{tpu_custom_call.1} parent=51 // pred_region
              // Predicated region
              $region68: #{tpu_custom_call.1} parent=55 // pred_check
                _
              $region69: #{tpu_custom_call.1} parent=55 // pred_check_branch
                %289 = sbr.rel (0) target = $region71
              $region70: #{tpu_custom_call.1} parent=55 // pred_region
                loop: start=0, step=1, limit=1
                $region72: #{tpu_custom_call.1} parent=70 // loop_pre_header
                  _
                $region73: #{tpu_custom_call.1} parent=70 // loop_header
                  %s291 = sphi 0, %s295
                  %p292 = scmp.ge.s32.totalorder %s291, 1
                  %s296 = sphi %s264, %s264
                  %s297 = sphi %s262, %s262
                $region74: #{tpu_custom_call.1} parent=70 // loop_header_branch
                  %294 = sbr.rel (%p292) target = $region78
                $region75: #{tpu_custom_call.1} parent=70 // loop_body
                  %v298 = vld [vmem:[%s296] sm:$0xff]
                  %299 = vst [vmem:[%s297] sm:$0xff] %v298
                  %v300 = vld [vmem:[%s296 + $0x10] sm:$0xff]
                  %301 = vst [vmem:[%s297 + $0x8] sm:$0xff] %v300
                  %v302 = vld [vmem:[%s296 + $0x20] sm:$0xff]
                  %303 = vst [vmem:[%s297 + $0x10] sm:$0xff] %v302
                  %v304 = vld [vmem:[%s296 + $0x30] sm:$0xff]
                  %305 = vst [vmem:[%s297 + $0x18] sm:$0xff] %v304
                $region76: #{tpu_custom_call.1} parent=70 // loop_footer
                  %s295 = sadd.s32 1, %s291
                $region77: #{tpu_custom_call.1} parent=70 // loop_footer_branch
                  %290 = sbr.rel target = $region73
                $region78: #{tpu_custom_call.1} parent=70 // loop_exit
                  _
              $region71: #{tpu_custom_call.1} parent=55 // pred_fallthru
                _
              // Predicated region
              $region79: #{tpu_custom_call.1} parent=55 // pred_check
                _
              $region80: #{tpu_custom_call.1} parent=55 // pred_check_branch
                %307 = sbr.rel target = $region82
              $region81: #{tpu_custom_call.1} parent=55 // pred_region
                _
              $region82: #{tpu_custom_call.1} parent=55 // pred_fallthru
                _
            $region56: #{tpu_custom_call.1} parent=51 // pred_fallthru
              _
            // Predicated region
            $region57: #{tpu_custom_call.1} parent=51 // pred_check
              _
            $region58: #{tpu_custom_call.1} parent=51 // pred_check_branch
              %270 = sbr.rel target = $region60
            $region59: #{tpu_custom_call.1} parent=51 // pred_region
              loop: start=0, step=1, limit=1
              $region61: #{tpu_custom_call.1} parent=59 // loop_pre_header
                _
              $region62: #{tpu_custom_call.1} parent=59 // loop_header
                %s273 = sphi 0, %s277
                %p274 = scmp.ge.s32.totalorder %s273, 1
                %s278 = sphi %s264, %s264
                %s279 = sphi %s262, %s262
              $region63: #{tpu_custom_call.1} parent=59 // loop_header_branch
                %276 = sbr.rel (%p274) target = $region67
              $region64: #{tpu_custom_call.1} parent=59 // loop_body
                %v280 = vld [vmem:[%s278] sm:$0xff]
                %281 = vst [vmem:[%s279] sm:$0xff] %v280
                %v282 = vld [vmem:[%s278 + $0x10] sm:$0xff]
                %283 = vst [vmem:[%s279 + $0x8] sm:$0xff] %v282
                %v284 = vld [vmem:[%s278 + $0x20] sm:$0xff]
                %285 = vst [vmem:[%s279 + $0x10] sm:$0xff] %v284
                %v286 = vld [vmem:[%s278 + $0x30] sm:$0xff]
                %287 = vst [vmem:[%s279 + $0x18] sm:$0xff] %v286
              $region65: #{tpu_custom_call.1} parent=59 // loop_footer
                %s277 = sadd.s32 1, %s273
              $region66: #{tpu_custom_call.1} parent=59 // loop_footer_branch
                %272 = sbr.rel target = $region62
              $region67: #{tpu_custom_call.1} parent=59 // loop_exit
                _
            $region60: #{tpu_custom_call.1} parent=51 // pred_fallthru
              _
          $region52: #{tpu_custom_call.1} parent=47 // pred_fallthru
            _
          %308 = vnop
        $region48: #{tpu_custom_call.1} parent=43 // pred_fallthru
          _
      $region44: #{tpu_custom_call.1} parent=5 // pred_fallthru
        _
      %p309 = scmp.le.s32.totalorder 1, %s17
      %p310 = scmp.lt.s32.totalorder %s17, 3
      %p311 = pnand %p309, %p310
      %p312 = pneg %p311
      // Predicated region
      $region83: #{tpu_custom_call.1} parent=5 // pred_check
        _
      $region84: #{tpu_custom_call.1} parent=5 // pred_check_branch
        %314 = sbr.rel (%p311) target = $region86
      $region85: #{tpu_custom_call.1} parent=5 // pred_region
        %s315 = ssub.s32 %s17, 1
        %s316 = sand.u32 %s30, 1
        %s317 = sand.u32 %s30, 1
        %s318 = smul.addr %s317, 32
        %s319 = scalar_lea.vmem [#allocation2], %s318
        // Predicated region
        $region87: #{tpu_custom_call.1} parent=85 // pred_check
          %p320 = pneg %p43
        $region88: #{tpu_custom_call.1} parent=85 // pred_check_branch
          %322 = sbr.rel (%p320) target = $region90
        $region89: #{tpu_custom_call.1} parent=85 // pred_region
          _
        $region90: #{tpu_custom_call.1} parent=85 // pred_fallthru
          _
        %s323 = sand.u32 %s30, 1
        %s324 = sand.u32 %s30, 1
        %s325 = smul.addr %s324, 32
        %s326 = scalar_lea.vmem [#allocation2], %s325
        %p327 = pneg %p43
        %p328 = pneg %p40
        %p329 = pneg %p64
        %p330 = pneg %p61
        %p331 = pneg %p85
        %p332 = pneg %p82
        %p333 = pneg %p106
        %p334 = pneg %p103
        %p335 = pneg %p127
        %p336 = pneg %p124
        %p337 = pneg %p148
        %p338 = pneg %p145
        %p339 = pneg %p169
        %p340 = pneg %p166
        %p341 = pneg %p190
        %p342 = pneg %p187
        %p343 = pneg %p216
        %p344 = pneg %p213
        %s345 = sand.u32 %s203, 1
        %s346 = scalar_lea.sflag [#allocation4], %s345
        %s347 = sand.u32 %s203, 1
        %s348 = smul.addr %s347, 16
        %s349 = scalar_lea.vmem [#allocation3], %s348
        %v351 = vld [vmem:[%s319] sm:$0xff]
        %v352 = vld [vmem:[%s319 + $0x8] sm:$0xff]
        %v353 = vld [vmem:[%s319 + $0x10] sm:$0xff]
        %v354 = vld [vmem:[%s319 + $0x18] sm:$0xff]
        %355 = vrot.lane.b32.xlu0 %v351, 9
        %v356 = vpop.permute.xlu0 %355
        %v357 = vld [vmem:[%s1] sm:$0x1]
        %v358 = vlaneseq
        %v359 = vshrl.u32 %v358, 7
        %v360 = vsub.s32 0, %v359
        %v361 = vrot.slane %v357, %v360
        %v362 = vmul.f32 %v356, %v361
        %363 = vrot.lane.b32.xlu0 %v351, 8
        %v364 = vpop.permute.xlu0 %363
        %v365 = vld [vmem:[%s1 + $0x1] sm:$0x1]
        %v366 = vlaneseq
        %v367 = vshrl.u32 %v366, 7
        %v368 = vsub.s32 0, %v367
        %v369 = vrot.slane %v365, %v368
        %v370 = vmul.f32 %v364, %v369
        %371 = vrot.lane.b32.xlu0 %v351, 7
        %v372 = vpop.permute.xlu0 %371
        %v373 = vld [vmem:[%s1 + $0x2] sm:$0x1]
        %v374 = vlaneseq
        %v375 = vshrl.u32 %v374, 7
        %v376 = vsub.s32 0, %v375
        %v377 = vrot.slane %v373, %v376
        %v378 = vmul.f32 %v372, %v377
        %379 = vrot.lane.b32.xlu0 %v351, 1
        %v380 = vpop.permute.xlu0 %379
        %v381 = vld [vmem:[%s1 + $0x3] sm:$0x1]
        %v382 = vlaneseq
        %v383 = vshrl.u32 %v382, 7
        %v384 = vsub.s32 0, %v383
        %v385 = vrot.slane %v381, %v384
        %v386 = vmul.f32 %v380, %v385
        %387 = vrot.lane.b32.xlu0 %v351, 127
        %v388 = vpop.permute.xlu0 %387
        %v389 = vld [vmem:[%s1 + $0x5] sm:$0x1]
        %v390 = vlaneseq
        %v391 = vshrl.u32 %v390, 7
        %v392 = vsub.s32 0, %v391
        %v393 = vrot.slane %v389, %v392
        %v394 = vmul.f32 %v388, %v393
        %395 = vrot.lane.b32.xlu0 %v351, 121
        %v396 = vpop.permute.xlu0 %395
        %v397 = vld [vmem:[%s1 + $0x6] sm:$0x1]
        %v398 = vlaneseq
        %v399 = vshrl.u32 %v398, 7
        %v400 = vsub.s32 0, %v399
        %v401 = vrot.slane %v397, %v400
        %v402 = vmul.f32 %v396, %v401
        %403 = vrot.lane.b32.xlu0 %v351, 120
        %v404 = vpop.permute.xlu0 %403
        %v405 = vld [vmem:[%s1 + $0x7] sm:$0x1]
        %v406 = vlaneseq
        %v407 = vshrl.u32 %v406, 7
        %v408 = vsub.s32 0, %v407
        %v409 = vrot.slane %v405, %v408
        %v410 = vmul.f32 %v404, %v409
        %411 = vrot.lane.b32.xlu0 %v351, 119
        %v412 = vpop.permute.xlu0 %411
        %v413 = vld [vmem:[%s1 + $0x8] sm:$0x1]
        %v414 = vlaneseq
        %v415 = vshrl.u32 %v414, 7
        %v416 = vsub.s32 0, %v415
        %v417 = vrot.slane %v413, %v416
        %v418 = vmul.f32 %v412, %v417
        %v419 = vld [vmem:[%s2] sm:$0xf]
        %v420 = vld [vmem:[%s2 + $0x4] sm:$0xf]
        %v421 = vld [vmem:[%s2 + $0x8] sm:$0xf]
        %v422 = vld [vmem:[%s2 + $0xc] sm:$0xf]
        %v423 = vld [vmem:[%s2 + $0x10] sm:$0xf]
        %v424 = vld [vmem:[%s2 + $0x14] sm:$0xf]
        %v425 = vld [vmem:[%s2 + $0x18] sm:$0xf]
        %v426 = vld [vmem:[%s2 + $0x1c] sm:$0xf]
        %v427 = vld [vmem:[%s2 + $0x20] sm:$0xf]
        %v428 = vld [vmem:[%s2 + $0x24] sm:$0xf]
        %v429 = vld [vmem:[%s2 + $0x28] sm:$0xf]
        %v430 = vld [vmem:[%s2 + $0x2c] sm:$0xf]
        %v431 = vld [vmem:[%s2 + $0x30] sm:$0xf]
        %v432 = vld [vmem:[%s2 + $0x34] sm:$0xf]
        %v433 = vld [vmem:[%s2 + $0x38] sm:$0xf]
        %v434 = vld [vmem:[%s2 + $0x3c] sm:$0xf]
        %v435 = vpack.c.bf16 %v370, %v362
        %v436 = vpack.c.bf16 %v386, %v378
        %v437 = vpack.c.bf16 %v394, %v351
        %v438 = vpack.c.bf16 %v410, %v402
        %v439 = vpack.c.bf16 %v352, %v418
        %v440 = vpack.c.bf16 %v354, %v353
        %v441 = vld [vmem:[%s3] sm:$0xff]
        %v442 = vld [vmem:[%s3 + $0x8] sm:$0xff]
        %v443 = vld [vmem:[%s3 + $0x10] sm:$0xff]
        %v444 = vld [vmem:[%s3 + $0x18] sm:$0xff]
        %v445 = vld [vmem:[%s3 + $0x20] sm:$0xff]
        %v446 = vld [vmem:[%s3 + $0x28] sm:$0xff]
        %v447 = vld [vmem:[%s3 + $0x30] sm:$0xff]
        %v448 = vld [vmem:[%s3 + $0x38] sm:$0xff]
        %v449 = vld [vmem:[%s3 + $0x40] sm:$0xff]
        %v450 = vld [vmem:[%s3 + $0x48] sm:$0xff]
        %v451 = vld [vmem:[%s3 + $0x50] sm:$0xff]
        %v452 = vld [vmem:[%s3 + $0x58] sm:$0xff]
        %v453 = vld [vmem:[%s3 + $0x60] sm:$0xff]
        %v454 = vld [vmem:[%s3 + $0x68] sm:$0xff]
        %v455 = vld [vmem:[%s3 + $0x70] sm:$0xff]
        %v456 = vld [vmem:[%s3 + $0x78] sm:$0xff]
        %458 = vset.pattern.permute.xlu0 0
        %459 = vperm.xlu0 %458, %v441
        %v460 = vpop.permute.xlu0 %459
        %463 = vset.pattern.permute.xlu0 0
        %464 = vperm.xlu0 %463, %v442
        %v465 = vpop.permute.xlu0 %464
        %468 = vset.pattern.permute.xlu0 0
        %469 = vperm.xlu0 %468, %v443
        %v470 = vpop.permute.xlu0 %469
        %473 = vset.pattern.permute.xlu0 0
        %474 = vperm.xlu0 %473, %v444
        %v475 = vpop.permute.xlu0 %474
        %478 = vset.pattern.permute.xlu0 0
        %479 = vperm.xlu0 %478, %v445
        %v480 = vpop.permute.xlu0 %479
        %483 = vset.pattern.permute.xlu0 0
        %484 = vperm.xlu0 %483, %v446
        %v485 = vpop.permute.xlu0 %484
        %488 = vset.pattern.permute.xlu0 0
        %489 = vperm.xlu0 %488, %v447
        %v490 = vpop.permute.xlu0 %489
        %493 = vset.pattern.permute.xlu0 0
        %494 = vperm.xlu0 %493, %v448
        %v495 = vpop.permute.xlu0 %494
        %498 = vset.pattern.permute.xlu0 0
        %499 = vperm.xlu0 %498, %v449
        %v500 = vpop.permute.xlu0 %499
        %503 = vset.pattern.permute.xlu0 0
        %504 = vperm.xlu0 %503, %v450
        %v505 = vpop.permute.xlu0 %504
        %508 = vset.pattern.permute.xlu0 0
        %509 = vperm.xlu0 %508, %v451
        %v510 = vpop.permute.xlu0 %509
        %513 = vset.pattern.permute.xlu0 0
        %514 = vperm.xlu0 %513, %v452
        %v515 = vpop.permute.xlu0 %514
        %518 = vset.pattern.permute.xlu0 0
        %519 = vperm.xlu0 %518, %v453
        %v520 = vpop.permute.xlu0 %519
        %523 = vset.pattern.permute.xlu0 0
        %524 = vperm.xlu0 %523, %v454
        %v525 = vpop.permute.xlu0 %524
        %528 = vset.pattern.permute.xlu0 0
        %529 = vperm.xlu0 %528, %v455
        %v530 = vpop.permute.xlu0 %529
        %533 = vset.pattern.permute.xlu0 0
        %534 = vperm.xlu0 %533, %v456
        %v535 = vpop.permute.xlu0 %534
        %v553 = vunpack.c.l.b16 %v419
        %v554 = vunpack.c.l.b16 %v420
        %v555 = vunpack.c.l.b16 %v421
        %v556 = vunpack.c.l.b16 %v422
        %v557 = vunpack.c.l.b16 %v423
        %v558 = vunpack.c.l.b16 %v424
        %v559 = vunpack.c.l.b16 %v425
        %v560 = vunpack.c.l.b16 %v426
        %v561 = vunpack.c.l.b16 %v427
        %v562 = vunpack.c.l.b16 %v428
        %v563 = vunpack.c.l.b16 %v429
        %v564 = vunpack.c.l.b16 %v430
        %v565 = vunpack.c.l.b16 %v431
        %v566 = vunpack.c.l.b16 %v432
        %v567 = vunpack.c.l.b16 %v433
        %v568 = vunpack.c.l.b16 %v434
        %v569 = vpack.c.b16 %v554, %v553
        %v570 = vpack.c.b16 %v556, %v555
        %v571 = vpack.c.b16 %v558, %v557
        %v572 = vpack.c.b16 %v560, %v559
        %v573 = vpack.c.b16 %v562, %v561
        %v574 = vpack.c.b16 %v564, %v563
        %v575 = vpack.c.b16 %v566, %v565
        %v576 = vpack.c.b16 %v568, %v567
        %vm577 = vcmask 785408
        %v579 = vsel %vm577, %v569, 0
        %v582 = vsel %vm577, %v570, 0
        %v585 = vsel %vm577, %v571, 0
        %v588 = vsel %vm577, %v572, 0
        %v591 = vsel %vm577, %v573, 0
        %v594 = vsel %vm577, %v574, 0
        %v597 = vsel %vm577, %v575, 0
        %v600 = vsel %vm577, %v576, 0
        %602 = vmatprep.subr.bf16.mxu0 0
        %603 = vmatpush1.bf16.msra.mxu0 %v435
        %604 = vmatprep.subr.bf16.mxu0 0
        %605 = vmatpush1.bf16.msra.mxu0 %v436
        %606 = vmatprep.subr.bf16.mxu0 0
        %607 = vmatpush1.bf16.msra.mxu0 %v437
        %608 = vmatprep.subr.bf16.mxu0 0
        %609 = vmatpush1.bf16.msra.mxu0 %v438
        %610 = vmatprep.subr.bf16.mxu0 0
        %611 = vmatpush1.bf16.msra.mxu0 %v439
        %612 = vmatprep.subr.bf16.mxu0 0
        %613 = vmatpush1.bf16.msra.mxu0 %v440
        %614 = vmatprep.subr.bf16.mxu0 0
        %615 = vmatpush1.bf16.msra.mxu0 0
        %616 = vmatprep.subr.bf16.mxu0 0
        %617 = vmatpush1.bf16.msra.mxu0 0
        %618 = vmatprep.subr.bf16.mxu0 0
        %619 = vmatpush1.bf16.msra.mxu0 0
        %620 = vmatprep.subr.bf16.mxu0 0
        %621 = vmatpush1.bf16.msra.mxu0 0
        %622 = vmatprep.subr.bf16.mxu0 0
        %623 = vmatpush1.bf16.msra.mxu0 0
        %624 = vmatprep.subr.bf16.mxu0 0
        %625 = vmatpush1.bf16.msra.mxu0 0
        %626 = vmatprep.subr.bf16.mxu0 0
        %627 = vmatpush1.bf16.msra.mxu0 0
        %628 = vmatprep.subr.bf16.mxu0 0
        %629 = vmatpush1.bf16.msra.mxu0 0
        %630 = vmatprep.subr.bf16.mxu0 0
        %631 = vmatpush1.bf16.msra.mxu0 0
        %632 = vmatprep.subr.bf16.mxu0 0
        %633 = vmatpush1.bf16.msra.mxu0 0
        %634 = vmatprep.mubr.bf16.mxu0 0
        %635 = vmatmul.mubr.bf16.gmra.mrb[0].mxu0 %v579
        %v636 = vpop.f32.mrb[0].mxu0
        %v637 = vadd.f32 %v460, %v636
        %v638 = vpop.f32.mrb[0].mxu0
        %v639 = vpop.f32.mrb[0].mxu0
        %v640 = vadd.f32 %v465, %v639
        %v641 = vpop.f32.mrb[0].mxu0
        %642 = vmatprep.mubr.bf16.mxu0 0
        %643 = vmatmul.mubr.bf16.gmra.mrb[0].mxu0 %v582
        %v644 = vpop.f32.mrb[0].mxu0
        %v645 = vadd.f32 %v470, %v644
        %v646 = vpop.f32.mrb[0].mxu0
        %v647 = vpop.f32.mrb[0].mxu0
        %v648 = vadd.f32 %v475, %v647
        %v649 = vpop.f32.mrb[0].mxu0
        %650 = vmatprep.mubr.bf16.mxu0 0
        %651 = vmatmul.mubr.bf16.gmra.mrb[0].mxu0 %v585
        %v652 = vpop.f32.mrb[0].mxu0
        %v653 = vadd.f32 %v480, %v652
        %v654 = vpop.f32.mrb[0].mxu0
        %v655 = vpop.f32.mrb[0].mxu0
        %v656 = vadd.f32 %v485, %v655
        %v657 = vpop.f32.mrb[0].mxu0
        %658 = vmatprep.mubr.bf16.mxu0 0
        %659 = vmatmul.mubr.bf16.gmra.mrb[0].mxu0 %v588
        %v660 = vpop.f32.mrb[0].mxu0
        %v661 = vadd.f32 %v490, %v660
        %v662 = vpop.f32.mrb[0].mxu0
        %v663 = vpop.f32.mrb[0].mxu0
        %v664 = vadd.f32 %v495, %v663
        %v665 = vpop.f32.mrb[0].mxu0
        %666 = vmatprep.mubr.bf16.mxu0 0
        %667 = vmatmul.mubr.bf16.gmra.mrb[0].mxu0 %v591
        %v668 = vpop.f32.mrb[0].mxu0
        %v669 = vadd.f32 %v500, %v668
        %v670 = vpop.f32.mrb[0].mxu0
        %v671 = vpop.f32.mrb[0].mxu0
        %v672 = vadd.f32 %v505, %v671
        %v673 = vpop.f32.mrb[0].mxu0
        %674 = vmatprep.mubr.bf16.mxu0 0
        %675 = vmatmul.mubr.bf16.gmra.mrb[0].mxu0 %v594
        %v676 = vpop.f32.mrb[0].mxu0
        %v677 = vadd.f32 %v510, %v676
        %v678 = vpop.f32.mrb[0].mxu0
        %v679 = vpop.f32.mrb[0].mxu0
        %v680 = vadd.f32 %v515, %v679
        %v681 = vpop.f32.mrb[0].mxu0
        %682 = vmatprep.mubr.bf16.mxu0 0
        %683 = vmatmul.mubr.bf16.gmra.mrb[0].mxu0 %v597
        %v684 = vpop.f32.mrb[0].mxu0
        %v685 = vadd.f32 %v520, %v684
        %v686 = vpop.f32.mrb[0].mxu0
        %v687 = vpop.f32.mrb[0].mxu0
        %v688 = vadd.f32 %v525, %v687
        %v689 = vpop.f32.mrb[0].mxu0
        %690 = vmatprep.mubr.bf16.mxu0 0
        %691 = vmatmul.mubr.bf16.gmra.mrb[0].mxu0 %v600
        %v692 = vpop.f32.mrb[0].mxu0
        %v693 = vadd.f32 %v530, %v692
        %v694 = vpop.f32.mrb[0].mxu0
        %v695 = vpop.f32.mrb[0].mxu0
        %v696 = vadd.f32 %v535, %v695
        %v697 = vpop.f32.mrb[0].mxu0
        %698 = vdwg.mxu0
        %v699 = vmul.f32 %v637, 0.5
        %v700 = vmul.f32 %v640, 0.5
        %v701 = vmul.f32 %v645, 0.5
        %v702 = vmul.f32 %v648, 0.5
        %v703 = vmul.f32 %v653, 0.5
        %v704 = vmul.f32 %v656, 0.5
        %v705 = vmul.f32 %v661, 0.5
        %v706 = vmul.f32 %v664, 0.5
        %v707 = vmul.f32 %v669, 0.5
        %v708 = vmul.f32 %v672, 0.5
        %v709 = vmul.f32 %v677, 0.5
        %v710 = vmul.f32 %v680, 0.5
        %v711 = vmul.f32 %v685, 0.5
        %v712 = vmul.f32 %v688, 0.5
        %v713 = vmul.f32 %v693, 0.5
        %v714 = vmul.f32 %v696, 0.5
        %v715 = vmul.f32 %v637, 0.70710677
        %v716 = vmul.f32 %v640, 0.70710677
        %v717 = vmul.f32 %v645, 0.70710677
        %v718 = vmul.f32 %v648, 0.70710677
        %v719 = vmul.f32 %v653, 0.70710677
        %v720 = vmul.f32 %v656, 0.70710677
        %v721 = vmul.f32 %v661, 0.70710677
        %v722 = vmul.f32 %v664, 0.70710677
        %v723 = vmul.f32 %v669, 0.70710677
        %v724 = vmul.f32 %v672, 0.70710677
        %v725 = vmul.f32 %v677, 0.70710677
        %v726 = vmul.f32 %v680, 0.70710677
        %v727 = vmul.f32 %v685, 0.70710677
        %v728 = vmul.f32 %v688, 0.70710677
        %v729 = vmul.f32 %v693, 0.70710677
        %v730 = vmul.f32 %v696, 0.70710677
        %v731 = verf.f32.pop %v715
        %v732 = verf.f32.pop %v716
        %v733 = verf.f32.pop %v717
        %v734 = verf.f32.pop %v718
        %v735 = verf.f32.pop %v719
        %v736 = verf.f32.pop %v720
        %v737 = verf.f32.pop %v721
        %v738 = verf.f32.pop %v722
        %v739 = verf.f32.pop %v723
        %v740 = verf.f32.pop %v724
        %v741 = verf.f32.pop %v725
        %v742 = verf.f32.pop %v726
        %v743 = verf.f32.pop %v727
        %v744 = verf.f32.pop %v728
        %v745 = verf.f32.pop %v729
        %v746 = verf.f32.pop %v730
        %v747 = vadd.f32 %v731, 1.0
        %v748 = vadd.f32 %v732, 1.0
        %v749 = vadd.f32 %v733, 1.0
        %v750 = vadd.f32 %v734, 1.0
        %v751 = vadd.f32 %v735, 1.0
        %v752 = vadd.f32 %v736, 1.0
        %v753 = vadd.f32 %v737, 1.0
        %v754 = vadd.f32 %v738, 1.0
        %v755 = vadd.f32 %v739, 1.0
        %v756 = vadd.f32 %v740, 1.0
        %v757 = vadd.f32 %v741, 1.0
        %v758 = vadd.f32 %v742, 1.0
        %v759 = vadd.f32 %v743, 1.0
        %v760 = vadd.f32 %v744, 1.0
        %v761 = vadd.f32 %v745, 1.0
        %v762 = vadd.f32 %v746, 1.0
        %v763 = vmul.f32 %v699, %v747
        %v764 = vmul.f32 %v700, %v748
        %v765 = vmul.f32 %v701, %v749
        %v766 = vmul.f32 %v702, %v750
        %v767 = vmul.f32 %v703, %v751
        %v768 = vmul.f32 %v704, %v752
        %v769 = vmul.f32 %v705, %v753
        %v770 = vmul.f32 %v706, %v754
        %v771 = vmul.f32 %v707, %v755
        %v772 = vmul.f32 %v708, %v756
        %v773 = vmul.f32 %v709, %v757
        %v774 = vmul.f32 %v710, %v758
        %v775 = vmul.f32 %v711, %v759
        %v776 = vmul.f32 %v712, %v760
        %v777 = vmul.f32 %v713, %v761
        %v778 = vmul.f32 %v714, %v762
        %779 = vrot.lane.b32.xlu0 %v763, 9
        %v780 = vpop.permute.xlu0 %779
        %781 = vrot.lane.b32.xlu0 %v764, 9
        %v782 = vpop.permute.xlu0 %781
        %783 = vrot.lane.b32.xlu0 %v765, 9
        %v784 = vpop.permute.xlu0 %783
        %785 = vrot.lane.b32.xlu0 %v766, 9
        %v786 = vpop.permute.xlu0 %785
        %787 = vrot.lane.b32.xlu0 %v767, 9
        %v788 = vpop.permute.xlu0 %787
        %789 = vrot.lane.b32.xlu0 %v768, 9
        %v790 = vpop.permute.xlu0 %789
        %791 = vrot.lane.b32.xlu0 %v769, 9
        %v792 = vpop.permute.xlu0 %791
        %793 = vrot.lane.b32.xlu0 %v770, 9
        %v794 = vpop.permute.xlu0 %793
        %v795 = vmul.f32 %v780, %v361
        %v796 = vmul.f32 %v782, %v361
        %v797 = vmul.f32 %v784, %v361
        %v798 = vmul.f32 %v786, %v361
        %v799 = vmul.f32 %v788, %v361
        %v800 = vmul.f32 %v790, %v361
        %v801 = vmul.f32 %v792, %v361
        %v802 = vmul.f32 %v794, %v361
        %v803 = vld [vmem:[%s4] sm:$0xff]
        %v804 = vld [vmem:[%s4 + $0x8] sm:$0xff]
        %v805 = vld [vmem:[%s4 + $0x10] sm:$0xff]
        %v806 = vld [vmem:[%s4 + $0x18] sm:$0xff]
        %v807 = vld [vmem:[%s4 + $0x20] sm:$0xff]
        %v808 = vld [vmem:[%s4 + $0x28] sm:$0xff]
        %v809 = vld [vmem:[%s4 + $0x30] sm:$0xff]
        %v810 = vld [vmem:[%s4 + $0x38] sm:$0xff]
        %812 = vset.pattern.permute.xlu0 0
        %813 = vperm.xlu0 %812, %v803
        %v814 = vpop.permute.xlu0 %813
        %817 = vset.pattern.permute.xlu0 0
        %818 = vperm.xlu0 %817, %v804
        %v819 = vpop.permute.xlu0 %818
        %822 = vset.pattern.permute.xlu0 0
        %823 = vperm.xlu0 %822, %v805
        %v824 = vpop.permute.xlu0 %823
        %827 = vset.pattern.permute.xlu0 0
        %828 = vperm.xlu0 %827, %v806
        %v829 = vpop.permute.xlu0 %828
        %832 = vset.pattern.permute.xlu0 0
        %833 = vperm.xlu0 %832, %v807
        %v834 = vpop.permute.xlu0 %833
        %837 = vset.pattern.permute.xlu0 0
        %838 = vperm.xlu0 %837, %v808
        %v839 = vpop.permute.xlu0 %838
        %842 = vset.pattern.permute.xlu0 0
        %843 = vperm.xlu0 %842, %v809
        %v844 = vpop.permute.xlu0 %843
        %847 = vset.pattern.permute.xlu0 0
        %848 = vperm.xlu0 %847, %v810
        %v849 = vpop.permute.xlu0 %848
        %v851 = vmul.f32 %v795, %v814
        %v852 = vmul.f32 %v796, %v819
        %v853 = vmul.f32 %v797, %v824
        %v854 = vmul.f32 %v798, %v829
        %v855 = vmul.f32 %v799, %v834
        %v856 = vmul.f32 %v800, %v839
        %v857 = vmul.f32 %v801, %v844
        %v858 = vmul.f32 %v802, %v849
        %v859 = vadd.f32 %v851, 0.0
        %v860 = vadd.f32 %v852, 0.0
        %v861 = vadd.f32 %v853, 0.0
        %v862 = vadd.f32 %v854, 0.0
        %v863 = vadd.f32 %v855, 0.0
        %v864 = vadd.f32 %v856, 0.0
        %v865 = vadd.f32 %v857, 0.0
        %v866 = vadd.f32 %v858, 0.0
        %867 = vrot.lane.b32.xlu0 %v763, 8
        %v868 = vpop.permute.xlu0 %867
        %869 = vrot.lane.b32.xlu0 %v764, 8
        %v870 = vpop.permute.xlu0 %869
        %871 = vrot.lane.b32.xlu0 %v765, 8
        %v872 = vpop.permute.xlu0 %871
        %873 = vrot.lane.b32.xlu0 %v766, 8
        %v874 = vpop.permute.xlu0 %873
        %875 = vrot.lane.b32.xlu0 %v767, 8
        %v876 = vpop.permute.xlu0 %875
        %877 = vrot.lane.b32.xlu0 %v768, 8
        %v878 = vpop.permute.xlu0 %877
        %879 = vrot.lane.b32.xlu0 %v769, 8
        %v880 = vpop.permute.xlu0 %879
        %881 = vrot.lane.b32.xlu0 %v770, 8
        %v882 = vpop.permute.xlu0 %881
        %v883 = vmul.f32 %v868, %v369
        %v884 = vmul.f32 %v870, %v369
        %v885 = vmul.f32 %v872, %v369
        %v886 = vmul.f32 %v874, %v369
        %v887 = vmul.f32 %v876, %v369
        %v888 = vmul.f32 %v878, %v369
        %v889 = vmul.f32 %v880, %v369
        %v890 = vmul.f32 %v882, %v369
        %891 = vset.pattern.permute.xlu0 1
        %892 = vperm.xlu0 %891, %v803
        %v893 = vpop.permute.xlu0 %892
        %895 = vset.pattern.permute.xlu0 1
        %896 = vperm.xlu0 %895, %v804
        %v897 = vpop.permute.xlu0 %896
        %899 = vset.pattern.permute.xlu0 1
        %900 = vperm.xlu0 %899, %v805
        %v901 = vpop.permute.xlu0 %900
        %903 = vset.pattern.permute.xlu0 1
        %904 = vperm.xlu0 %903, %v806
        %v905 = vpop.permute.xlu0 %904
        %907 = vset.pattern.permute.xlu0 1
        %908 = vperm.xlu0 %907, %v807
        %v909 = vpop.permute.xlu0 %908
        %911 = vset.pattern.permute.xlu0 1
        %912 = vperm.xlu0 %911, %v808
        %v913 = vpop.permute.xlu0 %912
        %915 = vset.pattern.permute.xlu0 1
        %916 = vperm.xlu0 %915, %v809
        %v917 = vpop.permute.xlu0 %916
        %919 = vset.pattern.permute.xlu0 1
        %920 = vperm.xlu0 %919, %v810
        %v921 = vpop.permute.xlu0 %920
        %v923 = vmul.f32 %v883, %v893
        %v924 = vmul.f32 %v884, %v897
        %v925 = vmul.f32 %v885, %v901
        %v926 = vmul.f32 %v886, %v905
        %v927 = vmul.f32 %v887, %v909
        %v928 = vmul.f32 %v888, %v913
        %v929 = vmul.f32 %v889, %v917
        %v930 = vmul.f32 %v890, %v921
        %v931 = vadd.f32 %v859, %v923
        %v932 = vadd.f32 %v860, %v924
        %v933 = vadd.f32 %v861, %v925
        %v934 = vadd.f32 %v862, %v926
        %v935 = vadd.f32 %v863, %v927
        %v936 = vadd.f32 %v864, %v928
        %v937 = vadd.f32 %v865, %v929
        %v938 = vadd.f32 %v866, %v930
        %939 = vrot.lane.b32.xlu0 %v763, 7
        %v940 = vpop.permute.xlu0 %939
        %941 = vrot.lane.b32.xlu0 %v764, 7
        %v942 = vpop.permute.xlu0 %941
        %943 = vrot.lane.b32.xlu0 %v765, 7
        %v944 = vpop.permute.xlu0 %943
        %945 = vrot.lane.b32.xlu0 %v766, 7
        %v946 = vpop.permute.xlu0 %945
        %947 = vrot.lane.b32.xlu0 %v767, 7
        %v948 = vpop.permute.xlu0 %947
        %949 = vrot.lane.b32.xlu0 %v768, 7
        %v950 = vpop.permute.xlu0 %949
        %951 = vrot.lane.b32.xlu0 %v769, 7
        %v952 = vpop.permute.xlu0 %951
        %953 = vrot.lane.b32.xlu0 %v770, 7
        %v954 = vpop.permute.xlu0 %953
        %v955 = vmul.f32 %v940, %v377
        %v956 = vmul.f32 %v942, %v377
        %v957 = vmul.f32 %v944, %v377
        %v958 = vmul.f32 %v946, %v377
        %v959 = vmul.f32 %v948, %v377
        %v960 = vmul.f32 %v950, %v377
        %v961 = vmul.f32 %v952, %v377
        %v962 = vmul.f32 %v954, %v377
        %963 = vset.pattern.permute.xlu0 2
        %964 = vperm.xlu0 %963, %v803
        %v965 = vpop.permute.xlu0 %964
        %967 = vset.pattern.permute.xlu0 2
        %968 = vperm.xlu0 %967, %v804
        %v969 = vpop.permute.xlu0 %968
        %971 = vset.pattern.permute.xlu0 2
        %972 = vperm.xlu0 %971, %v805
        %v973 = vpop.permute.xlu0 %972
        %975 = vset.pattern.permute.xlu0 2
        %976 = vperm.xlu0 %975, %v806
        %v977 = vpop.permute.xlu0 %976
        %979 = vset.pattern.permute.xlu0 2
        %980 = vperm.xlu0 %979, %v807
        %v981 = vpop.permute.xlu0 %980
        %983 = vset.pattern.permute.xlu0 2
        %984 = vperm.xlu0 %983, %v808
        %v985 = vpop.permute.xlu0 %984
        %987 = vset.pattern.permute.xlu0 2
        %988 = vperm.xlu0 %987, %v809
        %v989 = vpop.permute.xlu0 %988
        %991 = vset.pattern.permute.xlu0 2
        %992 = vperm.xlu0 %991, %v810
        %v993 = vpop.permute.xlu0 %992
        %v995 = vmul.f32 %v955, %v965
        %v996 = vmul.f32 %v956, %v969
        %v997 = vmul.f32 %v957, %v973
        %v998 = vmul.f32 %v958, %v977
        %v999 = vmul.f32 %v959, %v981
        %v1000 = vmul.f32 %v960, %v985
        %v1001 = vmul.f32 %v961, %v989
        %v1002 = vmul.f32 %v962, %v993
        %v1003 = vadd.f32 %v931, %v995
        %v1004 = vadd.f32 %v932, %v996
        %v1005 = vadd.f32 %v933, %v997
        %v1006 = vadd.f32 %v934, %v998
        %v1007 = vadd.f32 %v935, %v999
        %v1008 = vadd.f32 %v936, %v1000
        %v1009 = vadd.f32 %v937, %v1001
        %v1010 = vadd.f32 %v938, %v1002
        %1011 = vrot.lane.b32.xlu0 %v763, 1
        %v1012 = vpop.permute.xlu0 %1011
        %1013 = vrot.lane.b32.xlu0 %v764, 1
        %v1014 = vpop.permute.xlu0 %1013
        %1015 = vrot.lane.b32.xlu0 %v765, 1
        %v1016 = vpop.permute.xlu0 %1015
        %1017 = vrot.lane.b32.xlu0 %v766, 1
        %v1018 = vpop.permute.xlu0 %1017
        %1019 = vrot.lane.b32.xlu0 %v767, 1
        %v1020 = vpop.permute.xlu0 %1019
        %1021 = vrot.lane.b32.xlu0 %v768, 1
        %v1022 = vpop.permute.xlu0 %1021
        %1023 = vrot.lane.b32.xlu0 %v769, 1
        %v1024 = vpop.permute.xlu0 %1023
        %1025 = vrot.lane.b32.xlu0 %v770, 1
        %v1026 = vpop.permute.xlu0 %1025
        %v1027 = vmul.f32 %v1012, %v385
        %v1028 = vmul.f32 %v1014, %v385
        %v1029 = vmul.f32 %v1016, %v385
        %v1030 = vmul.f32 %v1018, %v385
        %v1031 = vmul.f32 %v1020, %v385
        %v1032 = vmul.f32 %v1022, %v385
        %v1033 = vmul.f32 %v1024, %v385
        %v1034 = vmul.f32 %v1026, %v385
        %1035 = vset.pattern.permute.xlu0 3
        %1036 = vperm.xlu0 %1035, %v803
        %v1037 = vpop.permute.xlu0 %1036
        %1039 = vset.pattern.permute.xlu0 3
        %1040 = vperm.xlu0 %1039, %v804
        %v1041 = vpop.permute.xlu0 %1040
        %1043 = vset.pattern.permute.xlu0 3
        %1044 = vperm.xlu0 %1043, %v805
        %v1045 = vpop.permute.xlu0 %1044
        %1047 = vset.pattern.permute.xlu0 3
        %1048 = vperm.xlu0 %1047, %v806
        %v1049 = vpop.permute.xlu0 %1048
        %1051 = vset.pattern.permute.xlu0 3
        %1052 = vperm.xlu0 %1051, %v807
        %v1053 = vpop.permute.xlu0 %1052
        %1055 = vset.pattern.permute.xlu0 3
        %1056 = vperm.xlu0 %1055, %v808
        %v1057 = vpop.permute.xlu0 %1056
        %1059 = vset.pattern.permute.xlu0 3
        %1060 = vperm.xlu0 %1059, %v809
        %v1061 = vpop.permute.xlu0 %1060
        %1063 = vset.pattern.permute.xlu0 3
        %1064 = vperm.xlu0 %1063, %v810
        %v1065 = vpop.permute.xlu0 %1064
        %v1067 = vmul.f32 %v1027, %v1037
        %v1068 = vmul.f32 %v1028, %v1041
        %v1069 = vmul.f32 %v1029, %v1045
        %v1070 = vmul.f32 %v1030, %v1049
        %v1071 = vmul.f32 %v1031, %v1053
        %v1072 = vmul.f32 %v1032, %v1057
        %v1073 = vmul.f32 %v1033, %v1061
        %v1074 = vmul.f32 %v1034, %v1065
        %v1075 = vadd.f32 %v1003, %v1067
        %v1076 = vadd.f32 %v1004, %v1068
        %v1077 = vadd.f32 %v1005, %v1069
        %v1078 = vadd.f32 %v1006, %v1070
        %v1079 = vadd.f32 %v1007, %v1071
        %v1080 = vadd.f32 %v1008, %v1072
        %v1081 = vadd.f32 %v1009, %v1073
        %v1082 = vadd.f32 %v1010, %v1074
        %1083 = vset.pattern.permute.xlu0 4
        %1084 = vperm.xlu0 %1083, %v803
        %v1085 = vpop.permute.xlu0 %1084
        %1087 = vset.pattern.permute.xlu0 4
        %1088 = vperm.xlu0 %1087, %v804
        %v1089 = vpop.permute.xlu0 %1088
        %1091 = vset.pattern.permute.xlu0 4
        %1092 = vperm.xlu0 %1091, %v805
        %v1093 = vpop.permute.xlu0 %1092
        %1095 = vset.pattern.permute.xlu0 4
        %1096 = vperm.xlu0 %1095, %v806
        %v1097 = vpop.permute.xlu0 %1096
        %1099 = vset.pattern.permute.xlu0 4
        %1100 = vperm.xlu0 %1099, %v807
        %v1101 = vpop.permute.xlu0 %1100
        %1103 = vset.pattern.permute.xlu0 4
        %1104 = vperm.xlu0 %1103, %v808
        %v1105 = vpop.permute.xlu0 %1104
        %1107 = vset.pattern.permute.xlu0 4
        %1108 = vperm.xlu0 %1107, %v809
        %v1109 = vpop.permute.xlu0 %1108
        %1111 = vset.pattern.permute.xlu0 4
        %1112 = vperm.xlu0 %1111, %v810
        %v1113 = vpop.permute.xlu0 %1112
        %v1115 = vmul.f32 %v763, %v1085
        %v1116 = vmul.f32 %v764, %v1089
        %v1117 = vmul.f32 %v765, %v1093
        %v1118 = vmul.f32 %v766, %v1097
        %v1119 = vmul.f32 %v767, %v1101
        %v1120 = vmul.f32 %v768, %v1105
        %v1121 = vmul.f32 %v769, %v1109
        %v1122 = vmul.f32 %v770, %v1113
        %v1123 = vadd.f32 %v1075, %v1115
        %v1124 = vadd.f32 %v1076, %v1116
        %v1125 = vadd.f32 %v1077, %v1117
        %v1126 = vadd.f32 %v1078, %v1118
        %v1127 = vadd.f32 %v1079, %v1119
        %v1128 = vadd.f32 %v1080, %v1120
        %v1129 = vadd.f32 %v1081, %v1121
        %v1130 = vadd.f32 %v1082, %v1122
        %1131 = vrot.lane.b32.xlu0 %v763, 127
        %v1132 = vpop.permute.xlu0 %1131
        %1133 = vrot.lane.b32.xlu0 %v764, 127
        %v1134 = vpop.permute.xlu0 %1133
        %1135 = vrot.lane.b32.xlu0 %v765, 127
        %v1136 = vpop.permute.xlu0 %1135
        %1137 = vrot.lane.b32.xlu0 %v766, 127
        %v1138 = vpop.permute.xlu0 %1137
        %1139 = vrot.lane.b32.xlu0 %v767, 127
        %v1140 = vpop.permute.xlu0 %1139
        %1141 = vrot.lane.b32.xlu0 %v768, 127
        %v1142 = vpop.permute.xlu0 %1141
        %1143 = vrot.lane.b32.xlu0 %v769, 127
        %v1144 = vpop.permute.xlu0 %1143
        %1145 = vrot.lane.b32.xlu0 %v770, 127
        %v1146 = vpop.permute.xlu0 %1145
        %v1147 = vmul.f32 %v1132, %v393
        %v1148 = vmul.f32 %v1134, %v393
        %v1149 = vmul.f32 %v1136, %v393
        %v1150 = vmul.f32 %v1138, %v393
        %v1151 = vmul.f32 %v1140, %v393
        %v1152 = vmul.f32 %v1142, %v393
        %v1153 = vmul.f32 %v1144, %v393
        %v1154 = vmul.f32 %v1146, %v393
        %1155 = vset.pattern.permute.xlu0 5
        %1156 = vperm.xlu0 %1155, %v803
        %v1157 = vpop.permute.xlu0 %1156
        %1159 = vset.pattern.permute.xlu0 5
        %1160 = vperm.xlu0 %1159, %v804
        %v1161 = vpop.permute.xlu0 %1160
        %1163 = vset.pattern.permute.xlu0 5
        %1164 = vperm.xlu0 %1163, %v805
        %v1165 = vpop.permute.xlu0 %1164
        %1167 = vset.pattern.permute.xlu0 5
        %1168 = vperm.xlu0 %1167, %v806
        %v1169 = vpop.permute.xlu0 %1168
        %1171 = vset.pattern.permute.xlu0 5
        %1172 = vperm.xlu0 %1171, %v807
        %v1173 = vpop.permute.xlu0 %1172
        %1175 = vset.pattern.permute.xlu0 5
        %1176 = vperm.xlu0 %1175, %v808
        %v1177 = vpop.permute.xlu0 %1176
        %1179 = vset.pattern.permute.xlu0 5
        %1180 = vperm.xlu0 %1179, %v809
        %v1181 = vpop.permute.xlu0 %1180
        %1183 = vset.pattern.permute.xlu0 5
        %1184 = vperm.xlu0 %1183, %v810
        %v1185 = vpop.permute.xlu0 %1184
        %v1187 = vmul.f32 %v1147, %v1157
        %v1188 = vmul.f32 %v1148, %v1161
        %v1189 = vmul.f32 %v1149, %v1165
        %v1190 = vmul.f32 %v1150, %v1169
        %v1191 = vmul.f32 %v1151, %v1173
        %v1192 = vmul.f32 %v1152, %v1177
        %v1193 = vmul.f32 %v1153, %v1181
        %v1194 = vmul.f32 %v1154, %v1185
        %v1195 = vadd.f32 %v1123, %v1187
        %v1196 = vadd.f32 %v1124, %v1188
        %v1197 = vadd.f32 %v1125, %v1189
        %v1198 = vadd.f32 %v1126, %v1190
        %v1199 = vadd.f32 %v1127, %v1191
        %v1200 = vadd.f32 %v1128, %v1192
        %v1201 = vadd.f32 %v1129, %v1193
        %v1202 = vadd.f32 %v1130, %v1194
        %1203 = vrot.lane.b32.xlu0 %v763, 121
        %v1204 = vpop.permute.xlu0 %1203
        %1205 = vrot.lane.b32.xlu0 %v764, 121
        %v1206 = vpop.permute.xlu0 %1205
        %1207 = vrot.lane.b32.xlu0 %v765, 121
        %v1208 = vpop.permute.xlu0 %1207
        %1209 = vrot.lane.b32.xlu0 %v766, 121
        %v1210 = vpop.permute.xlu0 %1209
        %1211 = vrot.lane.b32.xlu0 %v767, 121
        %v1212 = vpop.permute.xlu0 %1211
        %1213 = vrot.lane.b32.xlu0 %v768, 121
        %v1214 = vpop.permute.xlu0 %1213
        %1215 = vrot.lane.b32.xlu0 %v769, 121
        %v1216 = vpop.permute.xlu0 %1215
        %1217 = vrot.lane.b32.xlu0 %v770, 121
        %v1218 = vpop.permute.xlu0 %1217
        %v1219 = vmul.f32 %v1204, %v401
        %v1220 = vmul.f32 %v1206, %v401
        %v1221 = vmul.f32 %v1208, %v401
        %v1222 = vmul.f32 %v1210, %v401
        %v1223 = vmul.f32 %v1212, %v401
        %v1224 = vmul.f32 %v1214, %v401
        %v1225 = vmul.f32 %v1216, %v401
        %v1226 = vmul.f32 %v1218, %v401
        %1227 = vset.pattern.permute.xlu0 6
        %1228 = vperm.xlu0 %1227, %v803
        %v1229 = vpop.permute.xlu0 %1228
        %1231 = vset.pattern.permute.xlu0 6
        %1232 = vperm.xlu0 %1231, %v804
        %v1233 = vpop.permute.xlu0 %1232
        %1235 = vset.pattern.permute.xlu0 6
        %1236 = vperm.xlu0 %1235, %v805
        %v1237 = vpop.permute.xlu0 %1236
        %1239 = vset.pattern.permute.xlu0 6
        %1240 = vperm.xlu0 %1239, %v806
        %v1241 = vpop.permute.xlu0 %1240
        %1243 = vset.pattern.permute.xlu0 6
        %1244 = vperm.xlu0 %1243, %v807
        %v1245 = vpop.permute.xlu0 %1244
        %1247 = vset.pattern.permute.xlu0 6
        %1248 = vperm.xlu0 %1247, %v808
        %v1249 = vpop.permute.xlu0 %1248
        %1251 = vset.pattern.permute.xlu0 6
        %1252 = vperm.xlu0 %1251, %v809
        %v1253 = vpop.permute.xlu0 %1252
        %1255 = vset.pattern.permute.xlu0 6
        %1256 = vperm.xlu0 %1255, %v810
        %v1257 = vpop.permute.xlu0 %1256
        %v1259 = vmul.f32 %v1219, %v1229
        %v1260 = vmul.f32 %v1220, %v1233
        %v1261 = vmul.f32 %v1221, %v1237
        %v1262 = vmul.f32 %v1222, %v1241
        %v1263 = vmul.f32 %v1223, %v1245
        %v1264 = vmul.f32 %v1224, %v1249
        %v1265 = vmul.f32 %v1225, %v1253
        %v1266 = vmul.f32 %v1226, %v1257
        %v1267 = vadd.f32 %v1195, %v1259
        %v1268 = vadd.f32 %v1196, %v1260
        %v1269 = vadd.f32 %v1197, %v1261
        %v1270 = vadd.f32 %v1198, %v1262
        %v1271 = vadd.f32 %v1199, %v1263
        %v1272 = vadd.f32 %v1200, %v1264
        %v1273 = vadd.f32 %v1201, %v1265
        %v1274 = vadd.f32 %v1202, %v1266
        %1275 = vrot.lane.b32.xlu0 %v763, 120
        %v1276 = vpop.permute.xlu0 %1275
        %1277 = vrot.lane.b32.xlu0 %v764, 120
        %v1278 = vpop.permute.xlu0 %1277
        %1279 = vrot.lane.b32.xlu0 %v765, 120
        %v1280 = vpop.permute.xlu0 %1279
        %1281 = vrot.lane.b32.xlu0 %v766, 120
        %v1282 = vpop.permute.xlu0 %1281
        %1283 = vrot.lane.b32.xlu0 %v767, 120
        %v1284 = vpop.permute.xlu0 %1283
        %1285 = vrot.lane.b32.xlu0 %v768, 120
        %v1286 = vpop.permute.xlu0 %1285
        %1287 = vrot.lane.b32.xlu0 %v769, 120
        %v1288 = vpop.permute.xlu0 %1287
        %1289 = vrot.lane.b32.xlu0 %v770, 120
        %v1290 = vpop.permute.xlu0 %1289
        %v1291 = vmul.f32 %v1276, %v409
        %v1292 = vmul.f32 %v1278, %v409
        %v1293 = vmul.f32 %v1280, %v409
        %v1294 = vmul.f32 %v1282, %v409
        %v1295 = vmul.f32 %v1284, %v409
        %v1296 = vmul.f32 %v1286, %v409
        %v1297 = vmul.f32 %v1288, %v409
        %v1298 = vmul.f32 %v1290, %v409
        %1299 = vset.pattern.permute.xlu0 7
        %1300 = vperm.xlu0 %1299, %v803
        %v1301 = vpop.permute.xlu0 %1300
        %1303 = vset.pattern.permute.xlu0 7
        %1304 = vperm.xlu0 %1303, %v804
        %v1305 = vpop.permute.xlu0 %1304
        %1307 = vset.pattern.permute.xlu0 7
        %1308 = vperm.xlu0 %1307, %v805
        %v1309 = vpop.permute.xlu0 %1308
        %1311 = vset.pattern.permute.xlu0 7
        %1312 = vperm.xlu0 %1311, %v806
        %v1313 = vpop.permute.xlu0 %1312
        %1315 = vset.pattern.permute.xlu0 7
        %1316 = vperm.xlu0 %1315, %v807
        %v1317 = vpop.permute.xlu0 %1316
        %1319 = vset.pattern.permute.xlu0 7
        %1320 = vperm.xlu0 %1319, %v808
        %v1321 = vpop.permute.xlu0 %1320
        %1323 = vset.pattern.permute.xlu0 7
        %1324 = vperm.xlu0 %1323, %v809
        %v1325 = vpop.permute.xlu0 %1324
        %1327 = vset.pattern.permute.xlu0 7
        %1328 = vperm.xlu0 %1327, %v810
        %v1329 = vpop.permute.xlu0 %1328
        %v1331 = vmul.f32 %v1291, %v1301
        %v1332 = vmul.f32 %v1292, %v1305
        %v1333 = vmul.f32 %v1293, %v1309
        %v1334 = vmul.f32 %v1294, %v1313
        %v1335 = vmul.f32 %v1295, %v1317
        %v1336 = vmul.f32 %v1296, %v1321
        %v1337 = vmul.f32 %v1297, %v1325
        %v1338 = vmul.f32 %v1298, %v1329
        %v1339 = vadd.f32 %v1267, %v1331
        %v1340 = vadd.f32 %v1268, %v1332
        %v1341 = vadd.f32 %v1269, %v1333
        %v1342 = vadd.f32 %v1270, %v1334
        %v1343 = vadd.f32 %v1271, %v1335
        %v1344 = vadd.f32 %v1272, %v1336
        %v1345 = vadd.f32 %v1273, %v1337
        %v1346 = vadd.f32 %v1274, %v1338
        %1347 = vrot.lane.b32.xlu0 %v763, 119
        %v1348 = vpop.permute.xlu0 %1347
        %1349 = vrot.lane.b32.xlu0 %v764, 119
        %v1350 = vpop.permute.xlu0 %1349
        %1351 = vrot.lane.b32.xlu0 %v765, 119
        %v1352 = vpop.permute.xlu0 %1351
        %1353 = vrot.lane.b32.xlu0 %v766, 119
        %v1354 = vpop.permute.xlu0 %1353
        %1355 = vrot.lane.b32.xlu0 %v767, 119
        %v1356 = vpop.permute.xlu0 %1355
        %1357 = vrot.lane.b32.xlu0 %v768, 119
        %v1358 = vpop.permute.xlu0 %1357
        %1359 = vrot.lane.b32.xlu0 %v769, 119
        %v1360 = vpop.permute.xlu0 %1359
        %1361 = vrot.lane.b32.xlu0 %v770, 119
        %v1362 = vpop.permute.xlu0 %1361
        %v1363 = vmul.f32 %v1348, %v417
        %v1364 = vmul.f32 %v1350, %v417
        %v1365 = vmul.f32 %v1352, %v417
        %v1366 = vmul.f32 %v1354, %v417
        %v1367 = vmul.f32 %v1356, %v417
        %v1368 = vmul.f32 %v1358, %v417
        %v1369 = vmul.f32 %v1360, %v417
        %v1370 = vmul.f32 %v1362, %v417
        %1371 = vset.pattern.permute.xlu0 8
        %1372 = vperm.xlu0 %1371, %v803
        %v1373 = vpop.permute.xlu0 %1372
        %1375 = vset.pattern.permute.xlu0 8
        %1376 = vperm.xlu0 %1375, %v804
        %v1377 = vpop.permute.xlu0 %1376
        %1379 = vset.pattern.permute.xlu0 8
        %1380 = vperm.xlu0 %1379, %v805
        %v1381 = vpop.permute.xlu0 %1380
        %1383 = vset.pattern.permute.xlu0 8
        %1384 = vperm.xlu0 %1383, %v806
        %v1385 = vpop.permute.xlu0 %1384
        %1387 = vset.pattern.permute.xlu0 8
        %1388 = vperm.xlu0 %1387, %v807
        %v1389 = vpop.permute.xlu0 %1388
        %1391 = vset.pattern.permute.xlu0 8
        %1392 = vperm.xlu0 %1391, %v808
        %v1393 = vpop.permute.xlu0 %1392
        %1395 = vset.pattern.permute.xlu0 8
        %1396 = vperm.xlu0 %1395, %v809
        %v1397 = vpop.permute.xlu0 %1396
        %1399 = vset.pattern.permute.xlu0 8
        %1400 = vperm.xlu0 %1399, %v810
        %v1401 = vpop.permute.xlu0 %1400
        %v1403 = vmul.f32 %v1363, %v1373
        %v1404 = vmul.f32 %v1364, %v1377
        %v1405 = vmul.f32 %v1365, %v1381
        %v1406 = vmul.f32 %v1366, %v1385
        %v1407 = vmul.f32 %v1367, %v1389
        %v1408 = vmul.f32 %v1368, %v1393
        %v1409 = vmul.f32 %v1369, %v1397
        %v1410 = vmul.f32 %v1370, %v1401
        %v1411 = vadd.f32 %v1339, %v1403
        %v1412 = vadd.f32 %v1340, %v1404
        %v1413 = vadd.f32 %v1341, %v1405
        %v1414 = vadd.f32 %v1342, %v1406
        %v1415 = vadd.f32 %v1343, %v1407
        %v1416 = vadd.f32 %v1344, %v1408
        %v1417 = vadd.f32 %v1345, %v1409
        %v1418 = vadd.f32 %v1346, %v1410
        %v1419 = vld [vmem:[%s5] sm:$0xff]
        %v1420 = vld [vmem:[%s5 + $0x8] sm:$0xff]
        %v1421 = vld [vmem:[%s5 + $0x10] sm:$0xff]
        %v1422 = vld [vmem:[%s5 + $0x18] sm:$0xff]
        %v1423 = vld [vmem:[%s5 + $0x20] sm:$0xff]
        %v1424 = vld [vmem:[%s5 + $0x28] sm:$0xff]
        %v1425 = vld [vmem:[%s5 + $0x30] sm:$0xff]
        %v1426 = vld [vmem:[%s5 + $0x38] sm:$0xff]
        %1428 = vset.pattern.permute.xlu0 0
        %1429 = vperm.xlu0 %1428, %v1419
        %v1430 = vpop.permute.xlu0 %1429
        %1433 = vset.pattern.permute.xlu0 0
        %1434 = vperm.xlu0 %1433, %v1420
        %v1435 = vpop.permute.xlu0 %1434
        %1438 = vset.pattern.permute.xlu0 0
        %1439 = vperm.xlu0 %1438, %v1421
        %v1440 = vpop.permute.xlu0 %1439
        %1443 = vset.pattern.permute.xlu0 0
        %1444 = vperm.xlu0 %1443, %v1422
        %v1445 = vpop.permute.xlu0 %1444
        %1448 = vset.pattern.permute.xlu0 0
        %1449 = vperm.xlu0 %1448, %v1423
        %v1450 = vpop.permute.xlu0 %1449
        %1453 = vset.pattern.permute.xlu0 0
        %1454 = vperm.xlu0 %1453, %v1424
        %v1455 = vpop.permute.xlu0 %1454
        %1458 = vset.pattern.permute.xlu0 0
        %1459 = vperm.xlu0 %1458, %v1425
        %v1460 = vpop.permute.xlu0 %1459
        %1463 = vset.pattern.permute.xlu0 0
        %1464 = vperm.xlu0 %1463, %v1426
        %v1465 = vpop.permute.xlu0 %1464
        %v1467 = vadd.f32 %v1411, %v1430
        %v1468 = vadd.f32 %v1412, %v1435
        %v1469 = vadd.f32 %v1413, %v1440
        %v1470 = vadd.f32 %v1414, %v1445
        %v1471 = vadd.f32 %v1415, %v1450
        %v1472 = vadd.f32 %v1416, %v1455
        %v1473 = vadd.f32 %v1417, %v1460
        %v1474 = vadd.f32 %v1418, %v1465
        %v1475 = vmul.f32 %v1467, 0.5
        %v1476 = vmul.f32 %v1468, 0.5
        %v1477 = vmul.f32 %v1469, 0.5
        %v1478 = vmul.f32 %v1470, 0.5
        %v1479 = vmul.f32 %v1471, 0.5
        %v1480 = vmul.f32 %v1472, 0.5
        %v1481 = vmul.f32 %v1473, 0.5
        %v1482 = vmul.f32 %v1474, 0.5
        %v1483 = vmul.f32 %v1467, 0.70710677
        %v1484 = vmul.f32 %v1468, 0.70710677
        %v1485 = vmul.f32 %v1469, 0.70710677
        %v1486 = vmul.f32 %v1470, 0.70710677
        %v1487 = vmul.f32 %v1471, 0.70710677
        %v1488 = vmul.f32 %v1472, 0.70710677
        %v1489 = vmul.f32 %v1473, 0.70710677
        %v1490 = vmul.f32 %v1474, 0.70710677
        %v1491 = verf.f32.pop %v1483
        %v1492 = verf.f32.pop %v1484
        %v1493 = verf.f32.pop %v1485
        %v1494 = verf.f32.pop %v1486
        %v1495 = verf.f32.pop %v1487
        %v1496 = verf.f32.pop %v1488
        %v1497 = verf.f32.pop %v1489
        %v1498 = verf.f32.pop %v1490
        %v1499 = vadd.f32 %v1491, 1.0
        %v1500 = vadd.f32 %v1492, 1.0
        %v1501 = vadd.f32 %v1493, 1.0
        %v1502 = vadd.f32 %v1494, 1.0
        %v1503 = vadd.f32 %v1495, 1.0
        %v1504 = vadd.f32 %v1496, 1.0
        %v1505 = vadd.f32 %v1497, 1.0
        %v1506 = vadd.f32 %v1498, 1.0
        %v1507 = vmul.f32 %v1475, %v1499
        %v1508 = vmul.f32 %v1476, %v1500
        %v1509 = vmul.f32 %v1477, %v1501
        %v1510 = vmul.f32 %v1478, %v1502
        %v1511 = vmul.f32 %v1479, %v1503
        %v1512 = vmul.f32 %v1480, %v1504
        %v1513 = vmul.f32 %v1481, %v1505
        %v1514 = vmul.f32 %v1482, %v1506
        %v1515 = vmul.f32 %v1507, %v771
        %v1516 = vmul.f32 %v1508, %v772
        %v1517 = vmul.f32 %v1509, %v773
        %v1518 = vmul.f32 %v1510, %v774
        %v1519 = vmul.f32 %v1511, %v775
        %v1520 = vmul.f32 %v1512, %v776
        %v1521 = vmul.f32 %v1513, %v777
        %v1522 = vmul.f32 %v1514, %v778
        %v1523 = vpack.c.bf16 %v1516, %v1515
        %v1524 = vpack.c.bf16 %v1518, %v1517
        %v1525 = vpack.c.bf16 %v1520, %v1519
        %v1526 = vpack.c.bf16 %v1522, %v1521
        %v1527 = vld [vmem:[%s6] sm:$0xf]
        %v1528 = vld [vmem:[%s6 + $0x4] sm:$0xf]
        %v1529 = vld [vmem:[%s6 + $0x8] sm:$0xf]
        %v1530 = vld [vmem:[%s6 + $0xc] sm:$0xf]
        %v1531 = vld [vmem:[%s7] sm:$0xff]
        %v1532 = vld [vmem:[%s7 + $0x8] sm:$0xff]
        %v1533 = vld [vmem:[%s7 + $0x10] sm:$0xff]
        %v1534 = vld [vmem:[%s7 + $0x18] sm:$0xff]
        %1536 = vset.pattern.permute.xlu0 0
        %1537 = vperm.xlu0 %1536, %v1531
        %v1538 = vpop.permute.xlu0 %1537
        %1541 = vset.pattern.permute.xlu0 0
        %1542 = vperm.xlu0 %1541, %v1532
        %v1543 = vpop.permute.xlu0 %1542
        %1546 = vset.pattern.permute.xlu0 0
        %1547 = vperm.xlu0 %1546, %v1533
        %v1548 = vpop.permute.xlu0 %1547
        %1551 = vset.pattern.permute.xlu0 0
        %1552 = vperm.xlu0 %1551, %v1534
        %v1553 = vpop.permute.xlu0 %1552
        %v1559 = vunpack.c.l.b16 %v1527
        %v1560 = vunpack.c.l.b16 %v1528
        %v1561 = vunpack.c.l.b16 %v1529
        %v1562 = vunpack.c.l.b16 %v1530
        %v1563 = vpack.c.b16 %v1560, %v1559
        %v1564 = vpack.c.b16 %v1562, %v1561
        %vm1565 = vcmask 523264
        %v1567 = vsel %vm1565, %v1563, 0
        %v1570 = vsel %vm1565, %v1564, 0
        %1572 = vmatprep.subr.bf16.mxu0 0
        %1573 = vmatpush1.bf16.msra.mxu0 %v1523
        %1574 = vmatprep.subr.bf16.mxu0 0
        %1575 = vmatpush1.bf16.msra.mxu0 %v1524
        %1576 = vmatprep.subr.bf16.mxu0 0
        %1577 = vmatpush1.bf16.msra.mxu0 %v1525
        %1578 = vmatprep.subr.bf16.mxu0 0
        %1579 = vmatpush1.bf16.msra.mxu0 %v1526
        %1580 = vmatprep.subr.bf16.mxu0 0
        %1581 = vmatpush1.bf16.msra.mxu0 0
        %1582 = vmatprep.subr.bf16.mxu0 0
        %1583 = vmatpush1.bf16.msra.mxu0 0
        %1584 = vmatprep.subr.bf16.mxu0 0
        %1585 = vmatpush1.bf16.msra.mxu0 0
        %1586 = vmatprep.subr.bf16.mxu0 0
        %1587 = vmatpush1.bf16.msra.mxu0 0
        %1588 = vmatprep.subr.bf16.mxu0 0
        %1589 = vmatpush1.bf16.msra.mxu0 0
        %1590 = vmatprep.subr.bf16.mxu0 0
        %1591 = vmatpush1.bf16.msra.mxu0 0
        %1592 = vmatprep.subr.bf16.mxu0 0
        %1593 = vmatpush1.bf16.msra.mxu0 0
        %1594 = vmatprep.subr.bf16.mxu0 0
        %1595 = vmatpush1.bf16.msra.mxu0 0
        %1596 = vmatprep.subr.bf16.mxu0 0
        %1597 = vmatpush1.bf16.msra.mxu0 0
        %1598 = vmatprep.subr.bf16.mxu0 0
        %1599 = vmatpush1.bf16.msra.mxu0 0
        %1600 = vmatprep.subr.bf16.mxu0 0
        %1601 = vmatpush1.bf16.msra.mxu0 0
        %1602 = vmatprep.subr.bf16.mxu0 0
        %1603 = vmatpush1.bf16.msra.mxu0 0
        %1604 = vmatprep.mubr.bf16.mxu0 0
        %1605 = vmatmul.mubr.bf16.gmra.mrb[0].mxu0 %v1567
        %v1606 = vpop.f32.mrb[0].mxu0
        %v1607 = vadd.f32 %v1538, %v1606
        %v1608 = vpop.f32.mrb[0].mxu0
        %v1609 = vpop.f32.mrb[0].mxu0
        %v1610 = vadd.f32 %v1543, %v1609
        %v1611 = vpop.f32.mrb[0].mxu0
        %1612 = vmatprep.mubr.bf16.mxu0 0
        %1613 = vmatmul.mubr.bf16.gmra.mrb[0].mxu0 %v1570
        %v1614 = vpop.f32.mrb[0].mxu0
        %v1615 = vadd.f32 %v1548, %v1614
        %v1616 = vpop.f32.mrb[0].mxu0
        %v1617 = vpop.f32.mrb[0].mxu0
        %v1618 = vadd.f32 %v1553, %v1617
        %v1619 = vpop.f32.mrb[0].mxu0
        %1620 = vdwg.mxu0
        %v1621 = vpack.c.bf16 %v1610, %v1607
        %v1622 = vpack.c.bf16 %v1618, %v1615
        %v1625 = vunpack.c.l.b16 %v1621
        %v1626 = vunpack.c.h.b16 %v1621
        %v1627 = vunpack.c.l.b16 %v1622
        %v1628 = vunpack.c.h.b16 %v1622
        %v1629 = vpack.c.b16 %v1625, %v1625
        %v1630 = vpack.c.b16 %v1626, %v1626
        %v1631 = vpack.c.b16 %v1627, %v1627
        %v1632 = vpack.c.b16 %v1628, %v1628
        %1637 = vst [vmem:[%s349] sm:$0xf] %v1629
        %1638 = vst [vmem:[%s349 + $0x4] sm:$0xf] %v1630
        %1639 = vst [vmem:[%s349 + $0x8] sm:$0xf] %v1631
        %1640 = vst [vmem:[%s349 + $0xc] sm:$0xf] %v1632
        %s1641 = sand.u32 %s203, 1
        %s1642 = scalar_lea.sflag [#allocation4], %s1641
        %s1643 = sand.u32 %s203, 1
        %s1644 = smul.addr %s1643, 16
        %s1645 = scalar_lea.vmem [#allocation3], %s1644
        // Predicated region
        $region91: #{tpu_custom_call.1} parent=85 // pred_check
          %p1646 = pneg %p213
        $region92: #{tpu_custom_call.1} parent=85 // pred_check_branch
          %1648 = sbr.rel (%p1646) target = $region94
        $region93: #{tpu_custom_call.1} parent=85 // pred_region
          %s1650 = ssub.s32 256, 256
          %1651 = vsyncadd %s1642, %s1650
          %s1652 = smul.addr %s22, 64
          %s1653 = scalar_lea.hbm %s8, %s1652
          %s1654 = sshll.u32 %s1645, 4
          %s1655 = int_to_ptr.vmem [resolvable:$true] %s1654
          %1660 = dma.vmem_to_hbm [thread:$0]  %s1655, 256, %s1653, %s1642, 64, 128, 4
        $region94: #{tpu_custom_call.1} parent=85 // pred_fallthru
          _
      $region86: #{tpu_custom_call.1} parent=5 // pred_fallthru
        _
      %p1661 = scmp.le.s32.totalorder 2, %s17
      // Predicated region
      $region95: #{tpu_custom_call.1} parent=5 // pred_check
        %p1662 = pneg %p1661
      $region96: #{tpu_custom_call.1} parent=5 // pred_check_branch
        %1664 = sbr.rel (%p1662) target = $region98
      $region97: #{tpu_custom_call.1} parent=5 // pred_region
        %s1665 = ssub.s32 %s17, 2
        // Predicated region
        $region99: #{tpu_custom_call.1} parent=97 // pred_check
          %p1666 = pneg %p219
        $region100: #{tpu_custom_call.1} parent=97 // pred_check_branch
          %1668 = sbr.rel (%p1666) target = $region102
        $region101: #{tpu_custom_call.1} parent=97 // pred_region
          %s1669 = sand.u32 %s204, 1
          %s1670 = scalar_lea.sflag [#allocation4], %s1669
          %s1671 = sand.u32 %s204, 1
          %s1672 = smul.addr %s1671, 16
          %s1673 = scalar_lea.vmem [#allocation3], %s1672
          %1674 = dma.done %s1670, 256
        $region102: #{tpu_custom_call.1} parent=97 // pred_fallthru
          _
      $region98: #{tpu_custom_call.1} parent=5 // pred_fallthru
        _
    $region6: #{tpu_custom_call.1} parent=1 // loop_footer
      %s21 = sadd.s32 1, %s17
    $region7: #{tpu_custom_call.1} parent=1 // loop_footer_branch
      %16 = sbr.rel target = $region3
    $region8: #{tpu_custom_call.1} parent=1 // loop_exit
      _
    %1675 = vsyncpa [#allocation4], 1
    %s1676 = scalar_lea.sflag [#allocation4], 1
    %1677 = vsyncpa %s1676, 1

</llo_original>
